<compile_context>
chip_gen: v7x
topology: tpu7x:2x2x1
jax: 0.10.0
libtpu: 0.0.40
codegen_flags: <defaults>
</compile_context>

<pallas_src>
import numpy as np
import jax
import jax.numpy as jnp
from jax.experimental import pallas as pl
from jax.experimental.pallas import tpu as pltpu


# -----------------------------------------------------------------------------
# Kernel A: sub-pixel (polyphase) ConvTranspose2d(k=4, s=2, p=1) + bias
# -----------------------------------------------------------------------------
def _deconv_phase_kernel(x_ref, wd_ref, bd_ref, o_ref):
    """One batch element, one output row-phase py = program_id(1).

    x_ref:  (1, H+2, W+2, Cin)  zero-padded low-res input (compute dtype)
    wd_ref: (2, 4, Cin, Cout)   weights for this py, indexed [px, 2*dy+dx]
    bd_ref: (1, Cout)           deconv bias (f32)
    o_ref:  (1, H, W, 2*Cout)   output rows oy = 2*m + py; the column phase px
                                is folded into the lane dim (px*Cout + c), so
                                the full array reshapes to the interleaved
                                upsampled image with zero data movement.
    """
    H = o_ref.shape[1]
    W = o_ref.shape[2]
    Cin = x_ref.shape[3]
    Cout = bd_ref.shape[1]
    py = pl.program_id(1)

    for px in range(2):
        acc = None
        for dy in range(2):
            for dx in range(2):
                # 2x2-tap window sliced directly from the Ref at compute dtype.
                win = x_ref[0, pl.ds(py + dy, H), px + dx:px + dx + W, :]
                part = jnp.dot(win.reshape(H * W, Cin),
                               wd_ref[px, 2 * dy + dx],
                               preferred_element_type=jnp.float32)
                acc = part if acc is None else acc + part
        acc = acc + bd_ref[...]
        o_ref[0, :, :, px * Cout:(px + 1) * Cout] = (
            acc.reshape(H, W, Cout).astype(o_ref.dtype))


def pallas_deconv_phases(x1p, wd, bd, *, vmem_limit_bytes):
    """x1p: (N, H+2, W+2, Cin); wd: (2, 2, 4, Cin, Cout); bd: (1, Cout)."""
    N, Hp, Wp, Cin = x1p.shape
    H, W = Hp - 2, Wp - 2
    Cout = wd.shape[-1]
    return pl.pallas_call(
        _deconv_phase_kernel,
        out_shape=jax.ShapeDtypeStruct((N, H, 2, W, 2 * Cout), x1p.dtype),
        grid_spec=pltpu.PrefetchScalarGridSpec(
            num_scalar_prefetch=0,
            grid=(N, 2),
            in_specs=[
                pl.BlockSpec((1, Hp, Wp, Cin), lambda n, p: (n, 0, 0, 0)),
                pl.BlockSpec((None, 2, 4, Cin, Cout),
                             lambda n, p: (p, 0, 0, 0, 0)),
                pl.BlockSpec((1, Cout), lambda n, p: (0, 0)),
            ],
            out_specs=pl.BlockSpec((1, H, None, W, 2 * Cout),
                                   lambda n, p: (n, 0, p, 0, 0)),
        ),
        compiler_params=pltpu.CompilerParams(
            dimension_semantics=("parallel", "parallel"),
            vmem_limit_bytes=vmem_limit_bytes),
    )(x1p, wd, bd)


# -----------------------------------------------------------------------------
# Kernel B: fused [concat + ReflectionPad2d(1) + Conv3x3 + BN(eval) + ReLU]
# -----------------------------------------------------------------------------
def _fused_pad_conv_bn_relu_kernel(x2_ref, u_ref, w2_ref, wu_ref,
                                   scale_ref, shift_ref, o_ref,
                                   p2_ref, pu_ref):
    """x2_ref: (1, Ho, Wo, C2)   skip connection (first channels of the cat)
    u_ref:     (1, Ho, Wo, Cu)   upsampled x1 (remaining channels of the cat)
    w2_ref:    (9, C2, Cout)     per-tap weights for the x2 channels
    wu_ref:    (9, Cu, Cout)     per-tap weights for the x1_up channels
    scale/shift: (1, Cout)       folded BatchNorm(eval) affine + conv bias (f32)
    o_ref:     (1, Ho*Wo, Cout)  flat lane-dense output (wrapper reshapes)
    p2_ref:    (Ho+2, Wo+2, C2)  VMEM reflect-padded x2 (compute dtype)
    pu_ref:    (Ho+2, Wo+2, Cu)  VMEM reflect-padded x1_up (compute dtype)
    """
    Ho = x2_ref.shape[1]
    Wo = x2_ref.shape[2]
    C2 = x2_ref.shape[3]
    Cu = u_ref.shape[3]

    def reflect_fill(dst, src):
        # ReflectionPad2d(1): row/col -1 mirrors row/col 1, row/col L mirrors L-2.
        dst[1:Ho + 1, 1:Wo + 1, :] = src
        dst[0:1, 1:Wo + 1, :] = src[1:2]
        dst[Ho + 1:Ho + 2, 1:Wo + 1, :] = src[Ho - 2:Ho - 1]
        dst[:, 0:1, :] = dst[:, 2:3, :]
        dst[:, Wo + 1:Wo + 2, :] = dst[:, Wo - 1:Wo, :]

    reflect_fill(p2_ref, x2_ref[0])
    reflect_fill(pu_ref, u_ref[0])

    # 3x3 conv as 9 accumulating per-tap matmul pairs (contraction C2 / Cu):
    # fuses the channel concat and avoids any 9x-image im2col scratch.
    acc = None
    for ky in range(3):
        for kx in range(3):
            t = 3 * ky + kx
            a2 = jnp.dot(
                p2_ref[ky:ky + Ho, kx:kx + Wo, :].reshape(Ho * Wo, C2),
                w2_ref[t], preferred_element_type=jnp.float32)
            au = jnp.dot(
                pu_ref[ky:ky + Ho, kx:kx + Wo, :].reshape(Ho * Wo, Cu),
                wu_ref[t], preferred_element_type=jnp.float32)
            tap = a2 + au
            acc = tap if acc is None else acc + tap

    acc = acc * scale_ref[...] + shift_ref[...]
    o_ref[0] = jnp.maximum(acc, 0.0).astype(o_ref.dtype)


def pallas_fused_pad_conv_bn_relu(x2, u, w2, wu, scale, shift, *,
                                  vmem_limit_bytes):
    N, Ho, Wo, C2 = x2.shape
    Cu = u.shape[3]
    Cout = w2.shape[2]
    return pl.pallas_call(
        _fused_pad_conv_bn_relu_kernel,
        out_shape=jax.ShapeDtypeStruct((N, Ho * Wo, Cout), jnp.float32),
        grid_spec=pltpu.PrefetchScalarGridSpec(
            num_scalar_prefetch=0,
            grid=(N,),
            in_specs=[
                pl.BlockSpec((1, Ho, Wo, C2), lambda n: (n, 0, 0, 0)),
                pl.BlockSpec((1, Ho, Wo, Cu), lambda n: (n, 0, 0, 0)),
                pl.BlockSpec((9, C2, Cout), lambda n: (0, 0, 0)),
                pl.BlockSpec((9, Cu, Cout), lambda n: (0, 0, 0)),
                pl.BlockSpec((1, Cout), lambda n: (0, 0)),
                pl.BlockSpec((1, Cout), lambda n: (0, 0)),
            ],
            out_specs=pl.BlockSpec((1, Ho * Wo, Cout), lambda n: (n, 0, 0)),
            scratch_shapes=[
                pltpu.VMEM((Ho + 2, Wo + 2, C2), x2.dtype),
                pltpu.VMEM((Ho + 2, Wo + 2, Cu), u.dtype),
            ],
        ),
        compiler_params=pltpu.CompilerParams(
            dimension_semantics=("parallel",),
            vmem_limit_bytes=vmem_limit_bytes),
    )(x2, u, w2, wu, scale, shift)


# -----------------------------------------------------------------------------
# Wrapper (PyTorch NCHW in / NCHW out)
# -----------------------------------------------------------------------------
def _clamp_vmem(nbytes):
    # Above the 16/32 MiB scoped defaults, below v7x's 64 MiB physical VMEM.
    return int(min(max(2 * nbytes, 32 << 20), 64 << 20))


def up_single_forward(x1, x2, params, *, compute_dtype=jnp.float32):
    """x1: (N, Cin, H, W), x2: (N, Ccat - Cout, 2H, 2W), NCHW. Returns NCHW."""
    wt, bt = params["deconv_w"], params["deconv_b"]   # (Cin, Cout, 4, 4), (Cout,)
    wc, bc = params["conv_w"], params["conv_b"]       # (Cout, Ccat, 3, 3), (Cout,)
    gamma, beta = params["bn_gamma"], params["bn_beta"]
    mean, var, eps = params["bn_mean"], params["bn_var"], params["bn_eps"]

    N, Cin, H, W = x1.shape
    Cout = wt.shape[1]
    C2 = x2.shape[1]
    Cu = Cout
    Ho, Wo = 2 * H, 2 * W
    assert Ho >= 2 and Wo >= 2, "ReflectionPad2d(1) needs spatial dims >= 2"
    assert wc.shape[1] == C2 + Cu, "conv in_channels must equal cat channels"
    cdt = compute_dtype
    isz = jnp.dtype(cdt).itemsize

    # NCHW -> NHWC (channels on the 128-lane axis inside the kernels).
    x1_nhwc = jnp.transpose(x1, (0, 2, 3, 1))
    x2_nhwc = jnp.transpose(x2, (0, 2, 3, 1)).astype(cdt)

    # --- stage 1: sub-pixel ConvTranspose2d(k=4, s=2, p=1) --------------------
    # 1-px zero halo so every 2x2 phase window is in bounds.
    x1p = jnp.pad(x1_nhwc, ((0, 0), (1, 1), (1, 1), (0, 0))).astype(cdt)
    # Phase (py, px): output pixel (2m+py, 2n+px) is a 2x2 conv over the padded
    # input with taps ky = 3-py-2*dy, kx = 3-px-2*dx at window offset (py+dy, px+dx).
    wd = jnp.stack([
        jnp.stack([
            jnp.stack([wt[:, :, 3 - py - 2 * dy, 3 - px - 2 * dx]
                       for dy in range(2) for dx in range(2)], axis=0)
            for px in range(2)], axis=0)
        for py in range(2)], axis=0).astype(cdt)          # (2, 2, 4, Cin, Cout)
    bd = bt.reshape(1, Cout).astype(jnp.float32)

    a_est = (2 * ((H + 2) * (W + 2) * Cin + 8 * Cin * Cout
                  + 2 * H * W * Cout) * isz
             + 4 * H * W * (Cin + 2 * Cout) * 4)
    phases = pallas_deconv_phases(x1p, wd, bd,
                                  vmem_limit_bytes=_clamp_vmem(a_est))
    # (N, H, 2, W, 2*Cout) -> (N, 2H, 2W, Cout): adjacent-dim reshape (bitcast),
    # so the phase interleave costs no HBM relayout round trip.
    up = phases.reshape(N, Ho, Wo, Cout)

    # --- stage 2: fused concat + ReflectionPad + Conv3x3 + BN(eval) + ReLU ----
    w_t = jnp.transpose(wc, (2, 3, 1, 0)).astype(cdt)     # (3, 3, Ccat, Cout)
    w2 = w_t[:, :, :C2, :].reshape(9, C2, Cout)
    wu = w_t[:, :, C2:, :].reshape(9, Cu, Cout)
    s = gamma / jnp.sqrt(var + eps)
    shift = (bc - mean) * s + beta

    b_est = (2 * (Ho * Wo * (C2 + Cu) * isz + 9 * (C2 + Cu) * Cout * isz
                  + Ho * Wo * Cout * 4)
             + (Ho + 2) * (Wo + 2) * (C2 + Cu) * isz
             + 2 * Ho * Wo * (Cout * 4 + max(C2, Cu) * isz))
    y = pallas_fused_pad_conv_bn_relu(
        x2_nhwc, up, w2, wu,
        s.reshape(1, Cout).astype(jnp.float32),
        shift.reshape(1, Cout).astype(jnp.float32),
        vmem_limit_bytes=_clamp_vmem(b_est))               # (N, Ho*Wo, Cout)
    y = y.reshape(N, Ho, Wo, Cout)
    return jnp.transpose(y, (0, 3, 1, 2))                  # back to NCHW


# ------------------------- pure-numpy reference ------------------------------
def ref_up_single(x1, x2, params):
    x1 = np.asarray(x1, np.float32)
    x2 = np.asarray(x2, np.float32)
    wt = np.asarray(params["deconv_w"]); bt = np.asarray(params["deconv_b"])
    wc = np.asarray(params["conv_w"]); bc = np.asarray(params["conv_b"])
    gamma = np.asarray(params["bn_gamma"]); beta = np.asarray(params["bn_beta"])
    mean = np.asarray(params["bn_mean"]); var = np.asarray(params["bn_var"])
    eps = params["bn_eps"]
    N, Cin, H, W = x1.shape
    Cout = wt.shape[1]
    K, stride, pad = 4, 2, 1
    Ho, Wo = 2 * H, 2 * W
    full = np.zeros((N, Cout, Ho + 2 * pad, Wo + 2 * pad), np.float32)
    for ky in range(K):
        for kx in range(K):
            full[:, :, ky:ky + stride * H:stride, kx:kx + stride * W:stride] += \
                np.einsum("nchw,cd->ndhw", x1, wt[:, :, ky, kx])
    x1_up = full[:, :, pad:pad + Ho, pad:pad + Wo] + bt[None, :, None, None]
    x = np.concatenate([x2, x1_up], axis=1)
    xp = np.pad(x, ((0, 0), (0, 0), (1, 1), (1, 1)), mode="reflect")
    out = np.zeros((N, Cout, Ho, Wo), np.float32)
    for ky in range(3):
        for kx in range(3):
            out += np.einsum("nchw,dc->ndhw",
                             xp[:, :, ky:ky + Ho, kx:kx + Wo], wc[:, :, ky, kx])
    out += bc[None, :, None, None]
    out = (out - mean[None, :, None, None]) / np.sqrt(var[None, :, None, None] + eps)
    out = out * gamma[None, :, None, None] + beta[None, :, None, None]
    return np.maximum(out, 0.0)


if __name__ == "__main__":
    key = jax.random.PRNGKey(0)
    N, Cin, Cout, H, W = 2, 8, 4, 8, 8     # x2 channels = Cin - Cout so cat has Cin
    ks = jax.random.split(key, 10)

    x1 = jax.random.normal(ks[0], (N, Cin, H, W), jnp.float32)
    x2 = jax.random.normal(ks[1], (N, Cin - Cout, 2 * H, 2 * W), jnp.float32)

    params = {
        "deconv_w": jax.random.normal(ks[2], (Cin, Cout, 4, 4), jnp.float32) * 0.1,
        "deconv_b": jax.random.normal(ks[3], (Cout,), jnp.float32) * 0.1,
        "conv_w":   jax.random.normal(ks[4], (Cout, Cin, 3, 3), jnp.float32) * 0.1,
        "conv_b":   jax.random.normal(ks[5], (Cout,), jnp.float32) * 0.1,
        "bn_gamma": 1.0 + 0.1 * jax.random.normal(ks[6], (Cout,), jnp.float32),
        "bn_beta":  0.1 * jax.random.normal(ks[7], (Cout,), jnp.float32),
        "bn_mean":  0.1 * jax.random.normal(ks[8], (Cout,), jnp.float32),
        "bn_var":   0.5 + jax.random.uniform(ks[9], (Cout,), jnp.float32),
        "bn_eps":   1e-5,
    }

    ref = ref_up_single(x1, x2, params)

    # f32 compute path: strict check against the pure-numpy reference.
    out = jax.block_until_ready(up_single_forward(x1, x2, params))
    assert out.shape == (N, Cout, 2 * H, 2 * W)
    np.testing.assert_allclose(np.asarray(out), ref, rtol=5e-4, atol=5e-4)

    # bf16 compute path (native MXU dtype on v6e/v7x): loose sanity check.
    out_bf16 = jax.block_until_ready(
        up_single_forward(x1, x2, params, compute_dtype=jnp.bfloat16))
    np.testing.assert_allclose(np.asarray(out_bf16), ref, rtol=1e-1, atol=1e-1)

    print("KERNEL_OK")
</pallas_src>

<mosaic_0001>
module attributes {stable_mosaic.version = 11 : i64} {
  func.func @_deconv_phase_kernel(%arg0: i32, %arg1: i32, %arg2: memref<1x10x10x8xf32, #tpu.memory_space<vmem>>, %arg3: memref<1x2x4x8x4xf32, #tpu.memory_space<vmem>>, %arg4: memref<1x4xf32, #tpu.memory_space<vmem>>, %arg5: memref<1x8x1x8x8xf32, #tpu.memory_space<vmem>>) attributes {dimension_semantics = [#tpu.dimension_semantics<parallel>, #tpu.dimension_semantics<parallel>], iteration_bounds = array<i64: 2, 2>, scalar_prefetch = 0 : i64, scratch_operands = 0 : i64, tpu.core_type = #tpu.core_type<tc>, window_params = [{transform_indices = @transform_0, window_bounds = array<i64: 1, 10, 10, 8>}, {transform_indices = @transform_1, window_bounds = array<i64: 1, 2, 4, 8, 4>}, {pipeline_mode = #tpu.pipeline_mode<synchronous>, transform_indices = @transform_2, window_bounds = array<i64: 1, 4>}, {transform_indices = @transform_3, window_bounds = array<i64: 1, 8, 1, 8, 8>}]} {
    %c0_i32 = arith.constant 0 : i32
    %0 = arith.addi %arg1, %c0_i32 : i32
    %c0 = arith.constant 0 : index
    %1 = arith.index_cast %0 : i32 to index
    %c0_0 = arith.constant 0 : index
    %c0_1 = arith.constant 0 : index
    %2 = vector.load %arg2[%c0, %1, %c0_0, %c0_1] : memref<1x10x10x8xf32, #tpu.memory_space<vmem>>, vector<1x8x8x8xf32>
    %3 = vector.shape_cast %2 : vector<1x8x8x8xf32> to vector<8x8x8xf32>
    %4 = vector.shape_cast %3 : vector<8x8x8xf32> to vector<64x8xf32>
    %c0_2 = arith.constant 0 : index
    %c0_3 = arith.constant 0 : index
    %c0_4 = arith.constant 0 : index
    %c0_5 = arith.constant 0 : index
    %c0_6 = arith.constant 0 : index
    %5 = vector.load %arg3[%c0_2, %c0_3, %c0_4, %c0_5, %c0_6] : memref<1x2x4x8x4xf32, #tpu.memory_space<vmem>>, vector<1x1x1x8x4xf32>
    %6 = vector.shape_cast %5 : vector<1x1x1x8x4xf32> to vector<8x4xf32>
    %cst = arith.constant dense<0.000000e+00> : vector<64x4xf32>
    %7 = tpu.matmul %4, %6, %cst {dimension_numbers = #tpu.dot_dimension_numbers<[1], [0], [0], [1], [0, 0, 1, 1], [], []>} : vector<64x8xf32>, vector<8x4xf32>, vector<64x4xf32> -> vector<64x4xf32>
    %c0_i32_7 = arith.constant 0 : i32
    %8 = arith.addi %arg1, %c0_i32_7 : i32
    %c0_8 = arith.constant 0 : index
    %9 = arith.index_cast %8 : i32 to index
    %c1 = arith.constant 1 : index
    %c0_9 = arith.constant 0 : index
    %10 = vector.load %arg2[%c0_8, %9, %c1, %c0_9] : memref<1x10x10x8xf32, #tpu.memory_space<vmem>>, vector<1x8x8x8xf32>
    %11 = vector.shape_cast %10 : vector<1x8x8x8xf32> to vector<8x8x8xf32>
    %12 = vector.shape_cast %11 : vector<8x8x8xf32> to vector<64x8xf32>
    %c0_10 = arith.constant 0 : index
    %c0_11 = arith.constant 0 : index
    %c1_12 = arith.constant 1 : index
    %c0_13 = arith.constant 0 : index
    %c0_14 = arith.constant 0 : index
    %13 = vector.load %arg3[%c0_10, %c0_11, %c1_12, %c0_13, %c0_14] : memref<1x2x4x8x4xf32, #tpu.memory_space<vmem>>, vector<1x1x1x8x4xf32>
    %14 = vector.shape_cast %13 : vector<1x1x1x8x4xf32> to vector<8x4xf32>
    %cst_15 = arith.constant dense<0.000000e+00> : vector<64x4xf32>
    %15 = tpu.matmul %12, %14, %cst_15 {dimension_numbers = #tpu.dot_dimension_numbers<[1], [0], [0], [1], [0, 0, 1, 1], [], []>} : vector<64x8xf32>, vector<8x4xf32>, vector<64x4xf32> -> vector<64x4xf32>
    %16 = arith.addf %7, %15 : vector<64x4xf32>
    %c1_i32 = arith.constant 1 : i32
    %17 = arith.addi %arg1, %c1_i32 : i32
    %c0_16 = arith.constant 0 : index
    %18 = arith.index_cast %17 : i32 to index
    %c0_17 = arith.constant 0 : index
    %c0_18 = arith.constant 0 : index
    %19 = vector.load %arg2[%c0_16, %18, %c0_17, %c0_18] : memref<1x10x10x8xf32, #tpu.memory_space<vmem>>, vector<1x8x8x8xf32>
    %20 = vector.shape_cast %19 : vector<1x8x8x8xf32> to vector<8x8x8xf32>
    %21 = vector.shape_cast %20 : vector<8x8x8xf32> to vector<64x8xf32>
    %c0_19 = arith.constant 0 : index
    %c0_20 = arith.constant 0 : index
    %c2 = arith.constant 2 : index
    %c0_21 = arith.constant 0 : index
    %c0_22 = arith.constant 0 : index
    %22 = vector.load %arg3[%c0_19, %c0_20, %c2, %c0_21, %c0_22] : memref<1x2x4x8x4xf32, #tpu.memory_space<vmem>>, vector<1x1x1x8x4xf32>
    %23 = vector.shape_cast %22 : vector<1x1x1x8x4xf32> to vector<8x4xf32>
    %cst_23 = arith.constant dense<0.000000e+00> : vector<64x4xf32>
    %24 = tpu.matmul %21, %23, %cst_23 {dimension_numbers = #tpu.dot_dimension_numbers<[1], [0], [0], [1], [0, 0, 1, 1], [], []>} : vector<64x8xf32>, vector<8x4xf32>, vector<64x4xf32> -> vector<64x4xf32>
    %25 = arith.addf %16, %24 : vector<64x4xf32>
    %c1_i32_24 = arith.constant 1 : i32
    %26 = arith.addi %arg1, %c1_i32_24 : i32
    %c0_25 = arith.constant 0 : index
    %27 = arith.index_cast %26 : i32 to index
    %c1_26 = arith.constant 1 : index
    %c0_27 = arith.constant 0 : index
    %28 = vector.load %arg2[%c0_25, %27, %c1_26, %c0_27] : memref<1x10x10x8xf32, #tpu.memory_space<vmem>>, vector<1x8x8x8xf32>
    %29 = vector.shape_cast %28 : vector<1x8x8x8xf32> to vector<8x8x8xf32>
    %30 = vector.shape_cast %29 : vector<8x8x8xf32> to vector<64x8xf32>
    %c0_28 = arith.constant 0 : index
    %c0_29 = arith.constant 0 : index
    %c3 = arith.constant 3 : index
    %c0_30 = arith.constant 0 : index
    %c0_31 = arith.constant 0 : index
    %31 = vector.load %arg3[%c0_28, %c0_29, %c3, %c0_30, %c0_31] : memref<1x2x4x8x4xf32, #tpu.memory_space<vmem>>, vector<1x1x1x8x4xf32>
    %32 = vector.shape_cast %31 : vector<1x1x1x8x4xf32> to vector<8x4xf32>
    %cst_32 = arith.constant dense<0.000000e+00> : vector<64x4xf32>
    %33 = tpu.matmul %30, %32, %cst_32 {dimension_numbers = #tpu.dot_dimension_numbers<[1], [0], [0], [1], [0, 0, 1, 1], [], []>} : vector<64x8xf32>, vector<8x4xf32>, vector<64x4xf32> -> vector<64x4xf32>
    %34 = arith.addf %25, %33 : vector<64x4xf32>
    %c0_33 = arith.constant 0 : index
    %c0_34 = arith.constant 0 : index
    %35 = vector.load %arg4[%c0_33, %c0_34] : memref<1x4xf32, #tpu.memory_space<vmem>>, vector<1x4xf32>
    %36 = vector.broadcast %35 : vector<1x4xf32> to vector<64x4xf32>
    %37 = arith.addf %34, %36 : vector<64x4xf32>
    %38 = vector.shape_cast %37 : vector<64x4xf32> to vector<8x8x4xf32>
    %c0_35 = arith.constant 0 : index
    %c0_36 = arith.constant 0 : index
    %c0_37 = arith.constant 0 : index
    %c0_38 = arith.constant 0 : index
    %c0_39 = arith.constant 0 : index
    %39 = vector.load %arg5[%c0_35, %c0_36, %c0_37, %c0_38, %c0_39] : memref<1x8x1x8x8xf32, #tpu.memory_space<vmem>>, vector<1x8x1x8x4xf32>
    %40 = vector.shape_cast %39 : vector<1x8x1x8x4xf32> to vector<8x8x4xf32>
    %41 = vector.shape_cast %38 : vector<8x8x4xf32> to vector<1x8x1x8x4xf32>
    tpu.vector_store %arg5[%c0_35, %c0_36, %c0_37, %c0_38, %c0_39], %41 {strides = array<i32>} : memref<1x8x1x8x8xf32, #tpu.memory_space<vmem>>, vector<1x8x1x8x4xf32>,
    %c0_i32_40 = arith.constant 0 : i32
    %42 = arith.addi %arg1, %c0_i32_40 : i32
    %c0_41 = arith.constant 0 : index
    %43 = arith.index_cast %42 : i32 to index
    %c1_42 = arith.constant 1 : index
    %c0_43 = arith.constant 0 : index
    %44 = vector.load %arg2[%c0_41, %43, %c1_42, %c0_43] : memref<1x10x10x8xf32, #tpu.memory_space<vmem>>, vector<1x8x8x8xf32>
    %45 = vector.shape_cast %44 : vector<1x8x8x8xf32> to vector<8x8x8xf32>
    %46 = vector.shape_cast %45 : vector<8x8x8xf32> to vector<64x8xf32>
    %c0_44 = arith.constant 0 : index
    %c1_45 = arith.constant 1 : index
    %c0_46 = arith.constant 0 : index
    %c0_47 = arith.constant 0 : index
    %c0_48 = arith.constant 0 : index
    %47 = vector.load %arg3[%c0_44, %c1_45, %c0_46, %c0_47, %c0_48] : memref<1x2x4x8x4xf32, #tpu.memory_space<vmem>>, vector<1x1x1x8x4xf32>
    %48 = vector.shape_cast %47 : vector<1x1x1x8x4xf32> to vector<8x4xf32>
    %cst_49 = arith.constant dense<0.000000e+00> : vector<64x4xf32>
    %49 = tpu.matmul %46, %48, %cst_49 {dimension_numbers = #tpu.dot_dimension_numbers<[1], [0], [0], [1], [0, 0, 1, 1], [], []>} : vector<64x8xf32>, vector<8x4xf32>, vector<64x4xf32> -> vector<64x4xf32>
    %c0_i32_50 = arith.constant 0 : i32
    %50 = arith.addi %arg1, %c0_i32_50 : i32
    %c0_51 = arith.constant 0 : index
    %51 = arith.index_cast %50 : i32 to index
    %c2_52 = arith.constant 2 : index
    %c0_53 = arith.constant 0 : index
    %52 = vector.load %arg2[%c0_51, %51, %c2_52, %c0_53] : memref<1x10x10x8xf32, #tpu.memory_space<vmem>>, vector<1x8x8x8xf32>
    %53 = vector.shape_cast %52 : vector<1x8x8x8xf32> to vector<8x8x8xf32>
    %54 = vector.shape_cast %53 : vector<8x8x8xf32> to vector<64x8xf32>
    %c0_54 = arith.constant 0 : index
    %c1_55 = arith.constant 1 : index
    %c1_56 = arith.constant 1 : index
    %c0_57 = arith.constant 0 : index
    %c0_58 = arith.constant 0 : index
    %55 = vector.load %arg3[%c0_54, %c1_55, %c1_56, %c0_57, %c0_58] : memref<1x2x4x8x4xf32, #tpu.memory_space<vmem>>, vector<1x1x1x8x4xf32>
    %56 = vector.shape_cast %55 : vector<1x1x1x8x4xf32> to vector<8x4xf32>
    %cst_59 = arith.constant dense<0.000000e+00> : vector<64x4xf32>
    %57 = tpu.matmul %54, %56, %cst_59 {dimension_numbers = #tpu.dot_dimension_numbers<[1], [0], [0], [1], [0, 0, 1, 1], [], []>} : vector<64x8xf32>, vector<8x4xf32>, vector<64x4xf32> -> vector<64x4xf32>
    %58 = arith.addf %49, %57 : vector<64x4xf32>
    %c1_i32_60 = arith.constant 1 : i32
    %59 = arith.addi %arg1, %c1_i32_60 : i32
    %c0_61 = arith.constant 0 : index
    %60 = arith.index_cast %59 : i32 to index
    %c1_62 = arith.constant 1 : index
    %c0_63 = arith.constant 0 : index
    %61 = vector.load %arg2[%c0_61, %60, %c1_62, %c0_63] : memref<1x10x10x8xf32, #tpu.memory_space<vmem>>, vector<1x8x8x8xf32>
    %62 = vector.shape_cast %61 : vector<1x8x8x8xf32> to vector<8x8x8xf32>
    %63 = vector.shape_cast %62 : vector<8x8x8xf32> to vector<64x8xf32>
    %c0_64 = arith.constant 0 : index
    %c1_65 = arith.constant 1 : index
    %c2_66 = arith.constant 2 : index
    %c0_67 = arith.constant 0 : index
    %c0_68 = arith.constant 0 : index
    %64 = vector.load %arg3[%c0_64, %c1_65, %c2_66, %c0_67, %c0_68] : memref<1x2x4x8x4xf32, #tpu.memory_space<vmem>>, vector<1x1x1x8x4xf32>
    %65 = vector.shape_cast %64 : vector<1x1x1x8x4xf32> to vector<8x4xf32>
    %cst_69 = arith.constant dense<0.000000e+00> : vector<64x4xf32>
    %66 = tpu.matmul %63, %65, %cst_69 {dimension_numbers = #tpu.dot_dimension_numbers<[1], [0], [0], [1], [0, 0, 1, 1], [], []>} : vector<64x8xf32>, vector<8x4xf32>, vector<64x4xf32> -> vector<64x4xf32>
    %67 = arith.addf %58, %66 : vector<64x4xf32>
    %c1_i32_70 = arith.constant 1 : i32
    %68 = arith.addi %arg1, %c1_i32_70 : i32
    %c0_71 = arith.constant 0 : index
    %69 = arith.index_cast %68 : i32 to index
    %c2_72 = arith.constant 2 : index
    %c0_73 = arith.constant 0 : index
    %70 = vector.load %arg2[%c0_71, %69, %c2_72, %c0_73] : memref<1x10x10x8xf32, #tpu.memory_space<vmem>>, vector<1x8x8x8xf32>
    %71 = vector.shape_cast %70 : vector<1x8x8x8xf32> to vector<8x8x8xf32>
    %72 = vector.shape_cast %71 : vector<8x8x8xf32> to vector<64x8xf32>
    %c0_74 = arith.constant 0 : index
    %c1_75 = arith.constant 1 : index
    %c3_76 = arith.constant 3 : index
    %c0_77 = arith.constant 0 : index
    %c0_78 = arith.constant 0 : index
    %73 = vector.load %arg3[%c0_74, %c1_75, %c3_76, %c0_77, %c0_78] : memref<1x2x4x8x4xf32, #tpu.memory_space<vmem>>, vector<1x1x1x8x4xf32>
    %74 = vector.shape_cast %73 : vector<1x1x1x8x4xf32> to vector<8x4xf32>
    %cst_79 = arith.constant dense<0.000000e+00> : vector<64x4xf32>
    %75 = tpu.matmul %72, %74, %cst_79 {dimension_numbers = #tpu.dot_dimension_numbers<[1], [0], [0], [1], [0, 0, 1, 1], [], []>} : vector<64x8xf32>, vector<8x4xf32>, vector<64x4xf32> -> vector<64x4xf32>
    %76 = arith.addf %67, %75 : vector<64x4xf32>
    %c0_80 = arith.constant 0 : index
    %c0_81 = arith.constant 0 : index
    %77 = vector.load %arg4[%c0_80, %c0_81] : memref<1x4xf32, #tpu.memory_space<vmem>>, vector<1x4xf32>
    %78 = vector.broadcast %77 : vector<1x4xf32> to vector<64x4xf32>
    %79 = arith.addf %76, %78 : vector<64x4xf32>
    %80 = vector.shape_cast %79 : vector<64x4xf32> to vector<8x8x4xf32>
    %c0_82 = arith.constant 0 : index
    %c0_83 = arith.constant 0 : index
    %c0_84 = arith.constant 0 : index
    %c0_85 = arith.constant 0 : index
    %c4 = arith.constant 4 : index
    %81 = vector.load %arg5[%c0_82, %c0_83, %c0_84, %c0_85, %c4] : memref<1x8x1x8x8xf32, #tpu.memory_space<vmem>>, vector<1x8x1x8x4xf32>
    %82 = vector.shape_cast %81 : vector<1x8x1x8x4xf32> to vector<8x8x4xf32>
    %83 = vector.shape_cast %80 : vector<8x8x4xf32> to vector<1x8x1x8x4xf32>
    tpu.vector_store %arg5[%c0_82, %c0_83, %c0_84, %c0_85, %c4], %83 {strides = array<i32>} : memref<1x8x1x8x8xf32, #tpu.memory_space<vmem>>, vector<1x8x1x8x4xf32>,
    return
  }
  func.func @transform_0(%arg0: i32, %arg1: i32) -> (i32, i32, i32, i32) {
    %c0_i32 = arith.constant 0 : i32
    %c0_i32_0 = arith.constant 0 : i32
    %c0_i32_1 = arith.constant 0 : i32
    %c0_i32_2 = arith.constant 0 : i32
    return %arg0, %c0_i32, %c0_i32_0, %c0_i32_1 : i32, i32, i32, i32
  }
  func.func @transform_1(%arg0: i32, %arg1: i32) -> (i32, i32, i32, i32, i32) {
    %c0_i32 = arith.constant 0 : i32
    %c0_i32_0 = arith.constant 0 : i32
    %c0_i32_1 = arith.constant 0 : i32
    %c0_i32_2 = arith.constant 0 : i32
    %c0_i32_3 = arith.constant 0 : i32
    return %arg1, %c0_i32, %c0_i32_0, %c0_i32_1, %c0_i32_2 : i32, i32, i32, i32, i32
  }
  func.func @transform_2(%arg0: i32, %arg1: i32) -> (i32, i32) {
    %c0_i32 = arith.constant 0 : i32
    %c0_i32_0 = arith.constant 0 : i32
    %c0_i32_1 = arith.constant 0 : i32
    return %c0_i32, %c0_i32_0 : i32, i32
  }
  func.func @transform_3(%arg0: i32, %arg1: i32) -> (i32, i32, i32, i32, i32) {
    %c0_i32 = arith.constant 0 : i32
    %c0_i32_0 = arith.constant 0 : i32
    %c0_i32_1 = arith.constant 0 : i32
    %c0_i32_2 = arith.constant 0 : i32
    return %arg0, %c0_i32, %arg1, %c0_i32_0, %c0_i32_1 : i32, i32, i32, i32, i32
  }
}

</mosaic_0001>

<llo_original>
// kernel: tpu_custom_call.1
$region0: #{tpu_custom_call.1}
  #allocation0 [shape = 'u32[]', space=smem, size = 0x4, offset = 0x4, fixed_abs, tag = 'smem constant byte address 0x4 - core index']
  #allocation1 [shape = 'u32[144,128]{1,0:T(1,128)}', space=vmem, size = 0x12000, scoped, tag = 'internal scratch']
  %s0 = inlined_call_operand.vmem [shape: f32[2,10,10,8], index: 0, kind: input, shape index: {}]
  %s1 = inlined_call_operand.vmem [shape: f32[2,2,4,8,4], index: 1, kind: input, shape index: {}]
  %s2 = inlined_call_operand.vmem [shape: f32[1,4], index: 2, kind: input, shape index: {}]
  %s3 = inlined_call_operand.hbm [shape: f32[2,8,2,8,8], index: 3, kind: output, shape index: {}]
  %s4 = sld [smem:[#allocation0]]
  $region45: #{tpu_custom_call.1} parent=0
    _
  %s6 = ssub.s32 1, %s4
  %s7 = scalar_select 0, %s6, %s4
  $region1: #{tpu_custom_call.1} parent=0
    #allocation2 [shape = 'u8[65536]{0}', space=vmem, size = 0x10000, scoped, tag = 'output window, operand 0']
    #allocation3 [shape = 's32[2]{0}', space=sflag, size = 0x8, scoped, tag = 'scoped memory for tpu_custom_call.1']
    %8 = vsyncpa [#allocation3], 0
    %s9 = scalar_lea.sflag [#allocation3], 1
    %10 = vsyncpa %s9, 0
    loop: start=0, step=1, limit=6
    $region2: #{tpu_custom_call.1} parent=1 // loop_pre_header
      _
    $region3: #{tpu_custom_call.1} parent=1 // loop_header
      %s12 = sphi 0, %s16
      %p13 = scmp.ge.s32.totalorder %s12, 6
      %s19 = sphi 0, %s31
      %s20 = sphi 0, %s27
      %s21 = sphi 0, %s19
      %s22 = sphi 0, %s20
      %s23 = sphi 0, %s21
      %s24 = sphi 0, %s22
      %s34 = sphi 0, %s36
      %s37 = sphi 0, %s34
      %s38 = sphi 0, %s37
      %s54 = sphi 0, %s38
      %s60 = sphi 0, %s62
      %s63 = sphi 0, %s60
      %s64 = sphi 0, %s63
      %s80 = sphi 0, %s64
      %s84 = sphi 0, %s84
      %s86 = sphi 0, %s84
      %s87 = sphi 0, %s86
      %s101 = sphi 0, %s87
      %s109 = sphi 0, %s111
      %s112 = sphi 0, %s109
      %s113 = sphi 0, %s112
      %s129 = sphi 0, %s113
    $region4: #{tpu_custom_call.1} parent=1 // loop_header_branch
      %15 = sbr.rel (%p13) target = $region8
    $region5: #{tpu_custom_call.1} parent=1 // loop_body
      %s17 = ssub.s32 %s12, 1
      %s18 = ssub.s32 %s12, 2
      %s25 = sadd.s32 1, %s20
      %p26 = scmp.ge.s32.totalorder %s25, 2
      %s27 = scalar_select %p26, 0, %s25
      %s28 = sadd.s32 1, %s19
      %s29 = scalar_select %p26, %s28, %s19
      %p30 = scmp.ge.s32.totalorder %s29, 2
      %s31 = scalar_select %p30, 0, %s29
      %s32 = ssub.s32 %s19, %s31
      %p33 = scmp.eq.s32.totalorder %s32, 0
      %s35 = sadd.s32 %s34, 1
      %s36 = scalar_select %p33, %s34, %s35
      %p39 = pneg %p33
      %p40 = scmp.eq.s32.totalorder %s12, 3
      %p41 = por %p39, %p40
      %p42 = scmp.ne.s32.totalorder %s34, %s37
      %p43 = scmp.eq.s32.totalorder %s12, 0
      %p44 = por %p42, %p43
      %p45 = scmp.ne.s32.totalorder %s34, %s37
      %p46 = scmp.eq.s32.totalorder %s17, 3
      %p47 = por %p45, %p46
      %p48 = scmp.ne.s32.totalorder %s37, %s38
      %p49 = scmp.eq.s32.totalorder %s17, 0
      %p50 = por %p48, %p49
      %p51 = scmp.ne.s32.totalorder %s37, %s38
      %p52 = scmp.eq.s32.totalorder %s18, 3
      %p53 = por %p51, %p52
      %p55 = scmp.ne.s32.totalorder %s38, %s54
      %p56 = scmp.eq.s32.totalorder %s18, 0
      %p57 = por %p55, %p56
      %s58 = ssub.s32 %s20, %s27
      %p59 = scmp.eq.s32.totalorder %s58, 0
      %s61 = sadd.s32 %s60, 1
      %s62 = scalar_select %p59, %s60, %s61
      %p65 = pneg %p59
      %p66 = scmp.eq.s32.totalorder %s12, 3
      %p67 = por %p65, %p66
      %p68 = scmp.ne.s32.totalorder %s60, %s63
      %p69 = scmp.eq.s32.totalorder %s12, 0
      %p70 = por %p68, %p69
      %p71 = scmp.ne.s32.totalorder %s60, %s63
      %p72 = scmp.eq.s32.totalorder %s17, 3
      %p73 = por %p71, %p72
      %p74 = scmp.ne.s32.totalorder %s63, %s64
      %p75 = scmp.eq.s32.totalorder %s17, 0
      %p76 = por %p74, %p75
      %p77 = scmp.ne.s32.totalorder %s63, %s64
      %p78 = scmp.eq.s32.totalorder %s18, 3
      %p79 = por %p77, %p78
      %p81 = scmp.ne.s32.totalorder %s64, %s80
      %p82 = scmp.eq.s32.totalorder %s18, 0
      %p83 = por %p81, %p82
      %s85 = sadd.s32 %s84, 1
      %p88 = scmp.eq.s32.totalorder %s12, 3
      %p89 = scmp.ne.s32.totalorder %s84, %s86
      %p90 = scmp.eq.s32.totalorder %s12, 0
      %p91 = por %p89, %p90
      %p92 = scmp.ne.s32.totalorder %s84, %s86
      %p93 = scmp.eq.s32.totalorder %s17, 3
      %p94 = por %p92, %p93
      %p95 = scmp.ne.s32.totalorder %s86, %s87
      %p96 = scmp.eq.s32.totalorder %s17, 0
      %p97 = por %p95, %p96
      %p98 = scmp.ne.s32.totalorder %s86, %s87
      %p99 = scmp.eq.s32.totalorder %s18, 3
      %p100 = por %p98, %p99
      %p102 = scmp.ne.s32.totalorder %s87, %s101
      %p103 = scmp.eq.s32.totalorder %s18, 0
      %p104 = por %p102, %p103
      %s105 = ssub.s32 %s19, %s31
      %s106 = ssub.s32 %s20, %s27
      %s107 = sor.u32 %s105, %s106
      %p108 = scmp.eq.s32.totalorder %s107, 0
      %s110 = sadd.s32 %s109, 1
      %s111 = scalar_select %p108, %s109, %s110
      %p114 = pneg %p108
      %p115 = scmp.eq.s32.totalorder %s12, 3
      %p116 = por %p114, %p115
      %p117 = scmp.ne.s32.totalorder %s109, %s112
      %p118 = scmp.eq.s32.totalorder %s12, 0
      %p119 = por %p117, %p118
      %p120 = scmp.ne.s32.totalorder %s109, %s112
      %p121 = scmp.eq.s32.totalorder %s17, 3
      %p122 = por %p120, %p121
      %p123 = scmp.ne.s32.totalorder %s112, %s113
      %p124 = scmp.eq.s32.totalorder %s17, 0
      %p125 = por %p123, %p124
      %p126 = scmp.ne.s32.totalorder %s112, %s113
      %p127 = scmp.eq.s32.totalorder %s18, 3
      %p128 = por %p126, %p127
      %p130 = scmp.ne.s32.totalorder %s113, %s129
      %p131 = scmp.eq.s32.totalorder %s18, 0
      %p132 = por %p130, %p131
      %p133 = scmp.le.s32.totalorder 1, %s12
      %p134 = scmp.lt.s32.totalorder %s12, 5
      %p135 = pnand %p133, %p134
      %p136 = pneg %p135
      // Predicated region
      $region9: #{tpu_custom_call.1} parent=5 // pred_check
        _
      $region10: #{tpu_custom_call.1} parent=5 // pred_check_branch
        %138 = sbr.rel (%p135) target = $region12
      $region11: #{tpu_custom_call.1} parent=5 // pred_region
        %s139 = ssub.s32 %s12, 1
        // Predicated region
        $region13: #{tpu_custom_call.1} parent=11 // pred_check
          %p140 = pneg %p97
        $region14: #{tpu_custom_call.1} parent=11 // pred_check_branch
          %142 = sbr.rel (%p140) target = $region16
        $region15: #{tpu_custom_call.1} parent=11 // pred_region
          _
        $region16: #{tpu_custom_call.1} parent=11 // pred_fallthru
          _
      $region12: #{tpu_custom_call.1} parent=5 // pred_fallthru
        _
      %p143 = scmp.lt.s32.totalorder %s12, 4
      // Predicated region
      $region17: #{tpu_custom_call.1} parent=5 // pred_check
        %p144 = pneg %p143
      $region18: #{tpu_custom_call.1} parent=5 // pred_check_branch
        %146 = sbr.rel (%p144) target = $region20
      $region19: #{tpu_custom_call.1} parent=5 // pred_region
        // Predicated region
        $region21: #{tpu_custom_call.1} parent=19 // pred_check
          %p147 = pneg %p44
        $region22: #{tpu_custom_call.1} parent=19 // pred_check_branch
          %149 = sbr.rel (%p147) target = $region24
        $region23: #{tpu_custom_call.1} parent=19 // pred_region
          %p150 = scmp.lt.s32.totalorder %s19, 1
          %s151 = scalar_select %p150, %s19, 1
          %s152 = smul.addr %s151, 20
          %s153 = smul.addr %s152, 8
          %s154 = scalar_lea.vmem %s0, %s153
        $region24: #{tpu_custom_call.1} parent=19 // pred_fallthru
          _
        // Predicated region
        $region25: #{tpu_custom_call.1} parent=19 // pred_check
          %p155 = pneg %p70
        $region26: #{tpu_custom_call.1} parent=19 // pred_check_branch
          %157 = sbr.rel (%p155) target = $region28
        $region27: #{tpu_custom_call.1} parent=19 // pred_region
          %p158 = scmp.lt.s32.totalorder %s20, 1
          %s159 = scalar_select %p158, %s20, 1
          %s160 = smul.addr %s159, 8
          %s161 = smul.addr %s160, 8
          %s162 = scalar_lea.vmem %s1, %s161
        $region28: #{tpu_custom_call.1} parent=19 // pred_fallthru
          _
      $region20: #{tpu_custom_call.1} parent=5 // pred_fallthru
        _
      %p163 = scmp.le.s32.totalorder 1, %s12
      %p164 = scmp.lt.s32.totalorder %s12, 5
      %p165 = pnand %p163, %p164
      %p166 = pneg %p165
      // Predicated region
      $region29: #{tpu_custom_call.1} parent=5 // pred_check
        _
      $region30: #{tpu_custom_call.1} parent=5 // pred_check_branch
        %168 = sbr.rel (%p165) target = $region32
      $region31: #{tpu_custom_call.1} parent=5 // pred_region
        %s169 = ssub.s32 %s12, 1
        %p170 = scmp.lt.s32.totalorder %s21, 1
        %s171 = scalar_select %p170, %s21, 1
        %s172 = smul.addr %s171, 20
        %s173 = smul.addr %s172, 8
        %s174 = scalar_lea.vmem %s0, %s173
        %p175 = pneg %p50
        %p176 = pneg %p47
        %p177 = scmp.lt.s32.totalorder %s22, 1
        %s178 = scalar_select %p177, %s22, 1
        %s179 = smul.addr %s178, 8
        %s180 = smul.addr %s179, 8
        %s181 = scalar_lea.vmem %s1, %s180
        %p182 = pneg %p76
        %p183 = pneg %p73
        %p184 = pneg %p97
        %p185 = pneg %p94
        %p186 = pneg %p125
        %p187 = pneg %p122
        %s188 = sand.u32 %s112, 1
        %s189 = scalar_lea.sflag [#allocation3], %s188
        %s190 = sand.u32 %s112, 1
        %s191 = smul.addr %s190, 64
        %s192 = scalar_lea.vmem [#allocation2], %s191
        %p193 = scmp.lt.s32.totalorder %s21, 1
        %s194 = scalar_select %p193, %s21, 1
        %s195 = smul.addr %s194, 20
        %s196 = smul.addr %s195, 8
        %s197 = scalar_lea.vmem %s0, %s196
        %p198 = scmp.lt.s32.totalorder %s22, 1
        %s199 = scalar_select %p198, %s22, 1
        %s200 = smul.addr %s199, 8
        %s201 = smul.addr %s200, 8
        %s202 = scalar_lea.vmem %s1, %s201
        %s203 = smul.u32 %s22, 16
        %s204 = scalar_lea.vmem %s197, %s203
        %v205 = vld [vmem:[%s204] sm:$0xff]
        %v206 = vld [vmem:[%s204 + $0x10] sm:$0xff]
        %v207 = vld [vmem:[%s204 + $0x20] sm:$0xff]
        %v208 = vld [vmem:[%s204 + $0x30] sm:$0xff]
        %v209 = vld [vmem:[%s204 + $0x40] sm:$0xff]
        %v210 = vld [vmem:[%s204 + $0x50] sm:$0xff]
        %v211 = vld [vmem:[%s204 + $0x60] sm:$0xff]
        %v212 = vld [vmem:[%s204 + $0x70] sm:$0xff]
        %v213 = vld [vmem:[%s202] sm:$0xff]
        %v214 = vld [vmem:[%s204 + $0x1] sm:$0xff]
        %v215 = vld [vmem:[%s204 + $0x11] sm:$0xff]
        %v216 = vld [vmem:[%s204 + $0x21] sm:$0xff]
        %v217 = vld [vmem:[%s204 + $0x31] sm:$0xff]
        %v218 = vld [vmem:[%s204 + $0x41] sm:$0xff]
        %v219 = vld [vmem:[%s204 + $0x51] sm:$0xff]
        %v220 = vld [vmem:[%s204 + $0x61] sm:$0xff]
        %v221 = vld [vmem:[%s204 + $0x71] sm:$0xff]
        %s222 = scalar_lea.vmem %s202, 8
        %v223 = vld [vmem:[%s222] sm:$0xff]
        %vm224 = vcmask 64512
        %v226 = vsel %vm224, %v214, 0
        %v229 = vsel %vm224, %v215, 0
        %v232 = vsel %vm224, %v216, 0
        %v235 = vsel %vm224, %v217, 0
        %v238 = vsel %vm224, %v218, 0
        %v241 = vsel %vm224, %v219, 0
        %v244 = vsel %vm224, %v220, 0
        %v247 = vsel %vm224, %v221, 0
        %249 = vmatprep.subr.mxu0 0.0
        %250 = vmatpush1.msra.mxu0 %v223
        %251 = vmatprep.subr.mxu0 0.0
        %252 = vmatpush1.msra.mxu0 0.0
        %253 = vmatprep.subr.mxu0 0.0
        %254 = vmatpush1.msra.mxu0 0.0
        %255 = vmatprep.subr.mxu0 0.0
        %256 = vmatpush1.msra.mxu0 0.0
        %257 = vmatprep.subr.mxu0 0.0
        %258 = vmatpush1.msra.mxu0 0.0
        %259 = vmatprep.subr.mxu0 0.0
        %260 = vmatpush1.msra.mxu0 0.0
        %261 = vmatprep.subr.mxu0 0.0
        %262 = vmatpush1.msra.mxu0 0.0
        %263 = vmatprep.subr.mxu0 0.0
        %264 = vmatpush1.msra.mxu0 0.0
        %265 = vmatprep.subr.mxu0 0.0
        %266 = vmatpush1.msra.mxu0 0.0
        %267 = vmatprep.subr.mxu0 0.0
        %268 = vmatpush1.msra.mxu0 0.0
        %269 = vmatprep.subr.mxu0 0.0
        %270 = vmatpush1.msra.mxu0 0.0
        %271 = vmatprep.subr.mxu0 0.0
        %272 = vmatpush1.msra.mxu0 0.0
        %273 = vmatprep.subr.mxu0 0.0
        %274 = vmatpush1.msra.mxu0 0.0
        %275 = vmatprep.subr.mxu0 0.0
        %276 = vmatpush1.msra.mxu0 0.0
        %277 = vmatprep.subr.mxu0 0.0
        %278 = vmatpush1.msra.mxu0 0.0
        %279 = vmatprep.subr.mxu0 0.0
        %280 = vmatpush1.msra.mxu0 0.0
        %281 = vmatprep.subr.mxu0 0.0
        %282 = vmatpush1.msra.mxu0 0.0
        %283 = vmatprep.subr.mxu0 0.0
        %284 = vmatpush1.msra.mxu0 0.0
        %285 = vmatprep.subr.mxu0 0.0
        %286 = vmatpush1.msra.mxu0 0.0
        %287 = vmatprep.subr.mxu0 0.0
        %288 = vmatpush1.msra.mxu0 0.0
        %289 = vmatprep.subr.mxu0 0.0
        %290 = vmatpush1.msra.mxu0 0.0
        %291 = vmatprep.subr.mxu0 0.0
        %292 = vmatpush1.msra.mxu0 0.0
        %293 = vmatprep.subr.mxu0 0.0
        %294 = vmatpush1.msra.mxu0 0.0
        %295 = vmatprep.subr.mxu0 0.0
        %296 = vmatpush1.msra.mxu0 0.0
        %297 = vmatprep.subr.mxu0 0.0
        %298 = vmatpush1.msra.mxu0 0.0
        %299 = vmatprep.subr.mxu0 0.0
        %300 = vmatpush1.msra.mxu0 0.0
        %301 = vmatprep.subr.mxu0 0.0
        %302 = vmatpush1.msra.mxu0 0.0
        %303 = vmatprep.subr.mxu0 0.0
        %304 = vmatpush1.msra.mxu0 0.0
        %305 = vmatprep.subr.mxu0 0.0
        %306 = vmatpush1.msra.mxu0 0.0
        %307 = vmatprep.subr.mxu0 0.0
        %308 = vmatpush1.msra.mxu0 0.0
        %309 = vmatprep.subr.mxu0 0.0
        %310 = vmatpush1.msra.mxu0 0.0
        %311 = vmatprep.subr.mxu0 0.0
        %312 = vmatpush1.msra.mxu0 0.0
        %313 = vmatprep.mubr.f32.mxu0 0.0
        %314 = vmatmul.mubr.f32.gmra.mrb[0].mxu0 %v226
        %v315 = vpop.f32.mrb[0].mxu0
        %v316 = vadd.f32 0.0, %v315
        %v317 = vpop.f32.mrb[0].mxu0
        %318 = vmatprep.mubr.f32.mxu0 0.0
        %319 = vmatmul.mubr.f32.gmra.mrb[0].mxu0 %v229
        %v320 = vpop.f32.mrb[0].mxu0
        %v321 = vadd.f32 0.0, %v320
        %v322 = vpop.f32.mrb[0].mxu0
        %323 = vmatprep.mubr.f32.mxu0 0.0
        %324 = vmatmul.mubr.f32.gmra.mrb[0].mxu0 %v232
        %v325 = vpop.f32.mrb[0].mxu0
        %v326 = vadd.f32 0.0, %v325
        %v327 = vpop.f32.mrb[0].mxu0
        %328 = vmatprep.mubr.f32.mxu0 0.0
        %329 = vmatmul.mubr.f32.gmra.mrb[0].mxu0 %v235
        %v330 = vpop.f32.mrb[0].mxu0
        %v331 = vadd.f32 0.0, %v330
        %v332 = vpop.f32.mrb[0].mxu0
        %333 = vmatprep.mubr.f32.mxu0 0.0
        %334 = vmatmul.mubr.f32.gmra.mrb[0].mxu0 %v238
        %v335 = vpop.f32.mrb[0].mxu0
        %v336 = vadd.f32 0.0, %v335
        %v337 = vpop.f32.mrb[0].mxu0
        %338 = vmatprep.mubr.f32.mxu0 0.0
        %339 = vmatmul.mubr.f32.gmra.mrb[0].mxu0 %v241
        %v340 = vpop.f32.mrb[0].mxu0
        %v341 = vadd.f32 0.0, %v340
        %v342 = vpop.f32.mrb[0].mxu0
        %343 = vmatprep.mubr.f32.mxu0 0.0
        %344 = vmatmul.mubr.f32.gmra.mrb[0].mxu0 %v244
        %v345 = vpop.f32.mrb[0].mxu0
        %v346 = vadd.f32 0.0, %v345
        %v347 = vpop.f32.mrb[0].mxu0
        %348 = vmatprep.mubr.f32.mxu0 0.0
        %349 = vmatmul.mubr.f32.gmra.mrb[0].mxu0 %v247
        %v350 = vpop.f32.mrb[0].mxu0
        %v351 = vadd.f32 0.0, %v350
        %v352 = vpop.f32.mrb[0].mxu0
        %353 = vdwg.mxu0
        %v355 = vsel %vm224, %v205, 0
        %v358 = vsel %vm224, %v206, 0
        %v361 = vsel %vm224, %v207, 0
        %v364 = vsel %vm224, %v208, 0
        %v367 = vsel %vm224, %v209, 0
        %v370 = vsel %vm224, %v210, 0
        %v373 = vsel %vm224, %v211, 0
        %v376 = vsel %vm224, %v212, 0
        %378 = vmatprep.subr.mxu0 0.0
        %379 = vmatpush1.msra.mxu0 %v213
        %380 = vmatprep.subr.mxu0 0.0
        %381 = vmatpush1.msra.mxu0 0.0
        %382 = vmatprep.subr.mxu0 0.0
        %383 = vmatpush1.msra.mxu0 0.0
        %384 = vmatprep.subr.mxu0 0.0
        %385 = vmatpush1.msra.mxu0 0.0
        %386 = vmatprep.subr.mxu0 0.0
        %387 = vmatpush1.msra.mxu0 0.0
        %388 = vmatprep.subr.mxu0 0.0
        %389 = vmatpush1.msra.mxu0 0.0
        %390 = vmatprep.subr.mxu0 0.0
        %391 = vmatpush1.msra.mxu0 0.0
        %392 = vmatprep.subr.mxu0 0.0
        %393 = vmatpush1.msra.mxu0 0.0
        %394 = vmatprep.subr.mxu0 0.0
        %395 = vmatpush1.msra.mxu0 0.0
        %396 = vmatprep.subr.mxu0 0.0
        %397 = vmatpush1.msra.mxu0 0.0
        %398 = vmatprep.subr.mxu0 0.0
        %399 = vmatpush1.msra.mxu0 0.0
        %400 = vmatprep.subr.mxu0 0.0
        %401 = vmatpush1.msra.mxu0 0.0
        %402 = vmatprep.subr.mxu0 0.0
        %403 = vmatpush1.msra.mxu0 0.0
        %404 = vmatprep.subr.mxu0 0.0
        %405 = vmatpush1.msra.mxu0 0.0
        %406 = vmatprep.subr.mxu0 0.0
        %407 = vmatpush1.msra.mxu0 0.0
        %408 = vmatprep.subr.mxu0 0.0
        %409 = vmatpush1.msra.mxu0 0.0
        %410 = vmatprep.subr.mxu0 0.0
        %411 = vmatpush1.msra.mxu0 0.0
        %412 = vmatprep.subr.mxu0 0.0
        %413 = vmatpush1.msra.mxu0 0.0
        %414 = vmatprep.subr.mxu0 0.0
        %415 = vmatpush1.msra.mxu0 0.0
        %416 = vmatprep.subr.mxu0 0.0
        %417 = vmatpush1.msra.mxu0 0.0
        %418 = vmatprep.subr.mxu0 0.0
        %419 = vmatpush1.msra.mxu0 0.0
        %420 = vmatprep.subr.mxu0 0.0
        %421 = vmatpush1.msra.mxu0 0.0
        %422 = vmatprep.subr.mxu0 0.0
        %423 = vmatpush1.msra.mxu0 0.0
        %424 = vmatprep.subr.mxu0 0.0
        %425 = vmatpush1.msra.mxu0 0.0
        %426 = vmatprep.subr.mxu0 0.0
        %427 = vmatpush1.msra.mxu0 0.0
        %428 = vmatprep.subr.mxu0 0.0
        %429 = vmatpush1.msra.mxu0 0.0
        %430 = vmatprep.subr.mxu0 0.0
        %431 = vmatpush1.msra.mxu0 0.0
        %432 = vmatprep.subr.mxu0 0.0
        %433 = vmatpush1.msra.mxu0 0.0
        %434 = vmatprep.subr.mxu0 0.0
        %435 = vmatpush1.msra.mxu0 0.0
        %436 = vmatprep.subr.mxu0 0.0
        %437 = vmatpush1.msra.mxu0 0.0
        %438 = vmatprep.subr.mxu0 0.0
        %439 = vmatpush1.msra.mxu0 0.0
        %440 = vmatprep.subr.mxu0 0.0
        %441 = vmatpush1.msra.mxu0 0.0
        %442 = vmatprep.mubr.f32.mxu0 0.0
        %443 = vmatmul.mubr.f32.gmra.mrb[0].mxu0 %v355
        %v444 = vpop.f32.mrb[0].mxu0
        %v445 = vadd.f32 %v316, %v444
        %v446 = vpop.f32.mrb[0].mxu0
        %447 = vmatprep.mubr.f32.mxu0 0.0
        %448 = vmatmul.mubr.f32.gmra.mrb[0].mxu0 %v358
        %v449 = vpop.f32.mrb[0].mxu0
        %v450 = vadd.f32 %v321, %v449
        %v451 = vpop.f32.mrb[0].mxu0
        %452 = vmatprep.mubr.f32.mxu0 0.0
        %453 = vmatmul.mubr.f32.gmra.mrb[0].mxu0 %v361
        %v454 = vpop.f32.mrb[0].mxu0
        %v455 = vadd.f32 %v326, %v454
        %v456 = vpop.f32.mrb[0].mxu0
        %457 = vmatprep.mubr.f32.mxu0 0.0
        %458 = vmatmul.mubr.f32.gmra.mrb[0].mxu0 %v364
        %v459 = vpop.f32.mrb[0].mxu0
        %v460 = vadd.f32 %v331, %v459
        %v461 = vpop.f32.mrb[0].mxu0
        %462 = vmatprep.mubr.f32.mxu0 0.0
        %463 = vmatmul.mubr.f32.gmra.mrb[0].mxu0 %v367
        %v464 = vpop.f32.mrb[0].mxu0
        %v465 = vadd.f32 %v336, %v464
        %v466 = vpop.f32.mrb[0].mxu0
        %467 = vmatprep.mubr.f32.mxu0 0.0
        %468 = vmatmul.mubr.f32.gmra.mrb[0].mxu0 %v370
        %v469 = vpop.f32.mrb[0].mxu0
        %v470 = vadd.f32 %v341, %v469
        %v471 = vpop.f32.mrb[0].mxu0
        %472 = vmatprep.mubr.f32.mxu0 0.0
        %473 = vmatmul.mubr.f32.gmra.mrb[0].mxu0 %v373
        %v474 = vpop.f32.mrb[0].mxu0
        %v475 = vadd.f32 %v346, %v474
        %v476 = vpop.f32.mrb[0].mxu0
        %477 = vmatprep.mubr.f32.mxu0 0.0
        %478 = vmatmul.mubr.f32.gmra.mrb[0].mxu0 %v376
        %v479 = vpop.f32.mrb[0].mxu0
        %v480 = vadd.f32 %v351, %v479
        %v481 = vpop.f32.mrb[0].mxu0
        %482 = vdwg.mxu0
        %s483 = sadd.s32 %s22, 1
        %s484 = smul.u32 %s483, 16
        %s485 = scalar_lea.vmem %s197, %s484
        %v486 = vld [vmem:[%s485] sm:$0xff]
        %v487 = vld [vmem:[%s485 + $0x10] sm:$0xff]
        %v488 = vld [vmem:[%s485 + $0x20] sm:$0xff]
        %v489 = vld [vmem:[%s485 + $0x30] sm:$0xff]
        %v490 = vld [vmem:[%s485 + $0x40] sm:$0xff]
        %v491 = vld [vmem:[%s485 + $0x50] sm:$0xff]
        %v492 = vld [vmem:[%s485 + $0x60] sm:$0xff]
        %v493 = vld [vmem:[%s485 + $0x70] sm:$0xff]
        %s494 = scalar_lea.vmem %s202, 16
        %v495 = vld [vmem:[%s494] sm:$0xff]
        %v497 = vsel %vm224, %v486, 0
        %v500 = vsel %vm224, %v487, 0
        %v503 = vsel %vm224, %v488, 0
        %v506 = vsel %vm224, %v489, 0
        %v509 = vsel %vm224, %v490, 0
        %v512 = vsel %vm224, %v491, 0
        %v515 = vsel %vm224, %v492, 0
        %v518 = vsel %vm224, %v493, 0
        %520 = vmatprep.subr.mxu0 0.0
        %521 = vmatpush1.msra.mxu0 %v495
        %522 = vmatprep.subr.mxu0 0.0
        %523 = vmatpush1.msra.mxu0 0.0
        %524 = vmatprep.subr.mxu0 0.0
        %525 = vmatpush1.msra.mxu0 0.0
        %526 = vmatprep.subr.mxu0 0.0
        %527 = vmatpush1.msra.mxu0 0.0
        %528 = vmatprep.subr.mxu0 0.0
        %529 = vmatpush1.msra.mxu0 0.0
        %530 = vmatprep.subr.mxu0 0.0
        %531 = vmatpush1.msra.mxu0 0.0
        %532 = vmatprep.subr.mxu0 0.0
        %533 = vmatpush1.msra.mxu0 0.0
        %534 = vmatprep.subr.mxu0 0.0
        %535 = vmatpush1.msra.mxu0 0.0
        %536 = vmatprep.subr.mxu0 0.0
        %537 = vmatpush1.msra.mxu0 0.0
        %538 = vmatprep.subr.mxu0 0.0
        %539 = vmatpush1.msra.mxu0 0.0
        %540 = vmatprep.subr.mxu0 0.0
        %541 = vmatpush1.msra.mxu0 0.0
        %542 = vmatprep.subr.mxu0 0.0
        %543 = vmatpush1.msra.mxu0 0.0
        %544 = vmatprep.subr.mxu0 0.0
        %545 = vmatpush1.msra.mxu0 0.0
        %546 = vmatprep.subr.mxu0 0.0
        %547 = vmatpush1.msra.mxu0 0.0
        %548 = vmatprep.subr.mxu0 0.0
        %549 = vmatpush1.msra.mxu0 0.0
        %550 = vmatprep.subr.mxu0 0.0
        %551 = vmatpush1.msra.mxu0 0.0
        %552 = vmatprep.subr.mxu0 0.0
        %553 = vmatpush1.msra.mxu0 0.0
        %554 = vmatprep.subr.mxu0 0.0
        %555 = vmatpush1.msra.mxu0 0.0
        %556 = vmatprep.subr.mxu0 0.0
        %557 = vmatpush1.msra.mxu0 0.0
        %558 = vmatprep.subr.mxu0 0.0
        %559 = vmatpush1.msra.mxu0 0.0
        %560 = vmatprep.subr.mxu0 0.0
        %561 = vmatpush1.msra.mxu0 0.0
        %562 = vmatprep.subr.mxu0 0.0
        %563 = vmatpush1.msra.mxu0 0.0
        %564 = vmatprep.subr.mxu0 0.0
        %565 = vmatpush1.msra.mxu0 0.0
        %566 = vmatprep.subr.mxu0 0.0
        %567 = vmatpush1.msra.mxu0 0.0
        %568 = vmatprep.subr.mxu0 0.0
        %569 = vmatpush1.msra.mxu0 0.0
        %570 = vmatprep.subr.mxu0 0.0
        %571 = vmatpush1.msra.mxu0 0.0
        %572 = vmatprep.subr.mxu0 0.0
        %573 = vmatpush1.msra.mxu0 0.0
        %574 = vmatprep.subr.mxu0 0.0
        %575 = vmatpush1.msra.mxu0 0.0
        %576 = vmatprep.subr.mxu0 0.0
        %577 = vmatpush1.msra.mxu0 0.0
        %578 = vmatprep.subr.mxu0 0.0
        %579 = vmatpush1.msra.mxu0 0.0
        %580 = vmatprep.subr.mxu0 0.0
        %581 = vmatpush1.msra.mxu0 0.0
        %582 = vmatprep.subr.mxu0 0.0
        %583 = vmatpush1.msra.mxu0 0.0
        %584 = vmatprep.mubr.f32.mxu0 0.0
        %585 = vmatmul.mubr.f32.gmra.mrb[0].mxu0 %v497
        %v586 = vpop.f32.mrb[0].mxu0
        %v587 = vadd.f32 0.0, %v586
        %v588 = vpop.f32.mrb[0].mxu0
        %589 = vmatprep.mubr.f32.mxu0 0.0
        %590 = vmatmul.mubr.f32.gmra.mrb[0].mxu0 %v500
        %v591 = vpop.f32.mrb[0].mxu0
        %v592 = vadd.f32 0.0, %v591
        %v593 = vpop.f32.mrb[0].mxu0
        %594 = vmatprep.mubr.f32.mxu0 0.0
        %595 = vmatmul.mubr.f32.gmra.mrb[0].mxu0 %v503
        %v596 = vpop.f32.mrb[0].mxu0
        %v597 = vadd.f32 0.0, %v596
        %v598 = vpop.f32.mrb[0].mxu0
        %599 = vmatprep.mubr.f32.mxu0 0.0
        %600 = vmatmul.mubr.f32.gmra.mrb[0].mxu0 %v506
        %v601 = vpop.f32.mrb[0].mxu0
        %v602 = vadd.f32 0.0, %v601
        %v603 = vpop.f32.mrb[0].mxu0
        %604 = vmatprep.mubr.f32.mxu0 0.0
        %605 = vmatmul.mubr.f32.gmra.mrb[0].mxu0 %v509
        %v606 = vpop.f32.mrb[0].mxu0
        %v607 = vadd.f32 0.0, %v606
        %v608 = vpop.f32.mrb[0].mxu0
        %609 = vmatprep.mubr.f32.mxu0 0.0
        %610 = vmatmul.mubr.f32.gmra.mrb[0].mxu0 %v512
        %v611 = vpop.f32.mrb[0].mxu0
        %v612 = vadd.f32 0.0, %v611
        %v613 = vpop.f32.mrb[0].mxu0
        %614 = vmatprep.mubr.f32.mxu0 0.0
        %615 = vmatmul.mubr.f32.gmra.mrb[0].mxu0 %v515
        %v616 = vpop.f32.mrb[0].mxu0
        %v617 = vadd.f32 0.0, %v616
        %v618 = vpop.f32.mrb[0].mxu0
        %619 = vmatprep.mubr.f32.mxu0 0.0
        %620 = vmatmul.mubr.f32.gmra.mrb[0].mxu0 %v518
        %v621 = vpop.f32.mrb[0].mxu0
        %v622 = vadd.f32 0.0, %v621
        %v623 = vpop.f32.mrb[0].mxu0
        %624 = vdwg.mxu0
        %v625 = vadd.f32 %v445, %v587
        %v626 = vadd.f32 %v450, %v592
        %v627 = vadd.f32 %v455, %v597
        %v628 = vadd.f32 %v460, %v602
        %v629 = vadd.f32 %v465, %v607
        %v630 = vadd.f32 %v470, %v612
        %v631 = vadd.f32 %v475, %v617
        %v632 = vadd.f32 %v480, %v622
        %v633 = vld [vmem:[%s485 + $0x1] sm:$0xff]
        %v634 = vld [vmem:[%s485 + $0x11] sm:$0xff]
        %v635 = vld [vmem:[%s485 + $0x21] sm:$0xff]
        %v636 = vld [vmem:[%s485 + $0x31] sm:$0xff]
        %v637 = vld [vmem:[%s485 + $0x41] sm:$0xff]
        %v638 = vld [vmem:[%s485 + $0x51] sm:$0xff]
        %v639 = vld [vmem:[%s485 + $0x61] sm:$0xff]
        %v640 = vld [vmem:[%s485 + $0x71] sm:$0xff]
        %s641 = scalar_lea.vmem %s202, 24
        %v642 = vld [vmem:[%s641] sm:$0xff]
        %v644 = vsel %vm224, %v633, 0
        %v647 = vsel %vm224, %v634, 0
        %v650 = vsel %vm224, %v635, 0
        %v653 = vsel %vm224, %v636, 0
        %v656 = vsel %vm224, %v637, 0
        %v659 = vsel %vm224, %v638, 0
        %v662 = vsel %vm224, %v639, 0
        %v665 = vsel %vm224, %v640, 0
        %667 = vmatprep.subr.mxu0 0.0
        %668 = vmatpush1.msra.mxu0 %v642
        %669 = vmatprep.subr.mxu0 0.0
        %670 = vmatpush1.msra.mxu0 0.0
        %671 = vmatprep.subr.mxu0 0.0
        %672 = vmatpush1.msra.mxu0 0.0
        %673 = vmatprep.subr.mxu0 0.0
        %674 = vmatpush1.msra.mxu0 0.0
        %675 = vmatprep.subr.mxu0 0.0
        %676 = vmatpush1.msra.mxu0 0.0
        %677 = vmatprep.subr.mxu0 0.0
        %678 = vmatpush1.msra.mxu0 0.0
        %679 = vmatprep.subr.mxu0 0.0
        %680 = vmatpush1.msra.mxu0 0.0
        %681 = vmatprep.subr.mxu0 0.0
        %682 = vmatpush1.msra.mxu0 0.0
        %683 = vmatprep.subr.mxu0 0.0
        %684 = vmatpush1.msra.mxu0 0.0
        %685 = vmatprep.subr.mxu0 0.0
        %686 = vmatpush1.msra.mxu0 0.0
        %687 = vmatprep.subr.mxu0 0.0
        %688 = vmatpush1.msra.mxu0 0.0
        %689 = vmatprep.subr.mxu0 0.0
        %690 = vmatpush1.msra.mxu0 0.0
        %691 = vmatprep.subr.mxu0 0.0
        %692 = vmatpush1.msra.mxu0 0.0
        %693 = vmatprep.subr.mxu0 0.0
        %694 = vmatpush1.msra.mxu0 0.0
        %695 = vmatprep.subr.mxu0 0.0
        %696 = vmatpush1.msra.mxu0 0.0
        %697 = vmatprep.subr.mxu0 0.0
        %698 = vmatpush1.msra.mxu0 0.0
        %699 = vmatprep.subr.mxu0 0.0
        %700 = vmatpush1.msra.mxu0 0.0
        %701 = vmatprep.subr.mxu0 0.0
        %702 = vmatpush1.msra.mxu0 0.0
        %703 = vmatprep.subr.mxu0 0.0
        %704 = vmatpush1.msra.mxu0 0.0
        %705 = vmatprep.subr.mxu0 0.0
        %706 = vmatpush1.msra.mxu0 0.0
        %707 = vmatprep.subr.mxu0 0.0
        %708 = vmatpush1.msra.mxu0 0.0
        %709 = vmatprep.subr.mxu0 0.0
        %710 = vmatpush1.msra.mxu0 0.0
        %711 = vmatprep.subr.mxu0 0.0
        %712 = vmatpush1.msra.mxu0 0.0
        %713 = vmatprep.subr.mxu0 0.0
        %714 = vmatpush1.msra.mxu0 0.0
        %715 = vmatprep.subr.mxu0 0.0
        %716 = vmatpush1.msra.mxu0 0.0
        %717 = vmatprep.subr.mxu0 0.0
        %718 = vmatpush1.msra.mxu0 0.0
        %719 = vmatprep.subr.mxu0 0.0
        %720 = vmatpush1.msra.mxu0 0.0
        %721 = vmatprep.subr.mxu0 0.0
        %722 = vmatpush1.msra.mxu0 0.0
        %723 = vmatprep.subr.mxu0 0.0
        %724 = vmatpush1.msra.mxu0 0.0
        %725 = vmatprep.subr.mxu0 0.0
        %726 = vmatpush1.msra.mxu0 0.0
        %727 = vmatprep.subr.mxu0 0.0
        %728 = vmatpush1.msra.mxu0 0.0
        %729 = vmatprep.subr.mxu0 0.0
        %730 = vmatpush1.msra.mxu0 0.0
        %731 = vmatprep.mubr.f32.mxu0 0.0
        %732 = vmatmul.mubr.f32.gmra.mrb[0].mxu0 %v644
        %v733 = vpop.f32.mrb[0].mxu0
        %v734 = vadd.f32 0.0, %v733
        %v735 = vpop.f32.mrb[0].mxu0
        %736 = vmatprep.mubr.f32.mxu0 0.0
        %737 = vmatmul.mubr.f32.gmra.mrb[0].mxu0 %v647
        %v738 = vpop.f32.mrb[0].mxu0
        %v739 = vadd.f32 0.0, %v738
        %v740 = vpop.f32.mrb[0].mxu0
        %741 = vmatprep.mubr.f32.mxu0 0.0
        %742 = vmatmul.mubr.f32.gmra.mrb[0].mxu0 %v650
        %v743 = vpop.f32.mrb[0].mxu0
        %v744 = vadd.f32 0.0, %v743
        %v745 = vpop.f32.mrb[0].mxu0
        %746 = vmatprep.mubr.f32.mxu0 0.0
        %747 = vmatmul.mubr.f32.gmra.mrb[0].mxu0 %v653
        %v748 = vpop.f32.mrb[0].mxu0
        %v749 = vadd.f32 0.0, %v748
        %v750 = vpop.f32.mrb[0].mxu0
        %751 = vmatprep.mubr.f32.mxu0 0.0
        %752 = vmatmul.mubr.f32.gmra.mrb[0].mxu0 %v656
        %v753 = vpop.f32.mrb[0].mxu0
        %v754 = vadd.f32 0.0, %v753
        %v755 = vpop.f32.mrb[0].mxu0
        %756 = vmatprep.mubr.f32.mxu0 0.0
        %757 = vmatmul.mubr.f32.gmra.mrb[0].mxu0 %v659
        %v758 = vpop.f32.mrb[0].mxu0
        %v759 = vadd.f32 0.0, %v758
        %v760 = vpop.f32.mrb[0].mxu0
        %761 = vmatprep.mubr.f32.mxu0 0.0
        %762 = vmatmul.mubr.f32.gmra.mrb[0].mxu0 %v662
        %v763 = vpop.f32.mrb[0].mxu0
        %v764 = vadd.f32 0.0, %v763
        %v765 = vpop.f32.mrb[0].mxu0
        %766 = vmatprep.mubr.f32.mxu0 0.0
        %767 = vmatmul.mubr.f32.gmra.mrb[0].mxu0 %v665
        %v768 = vpop.f32.mrb[0].mxu0
        %v769 = vadd.f32 0.0, %v768
        %v770 = vpop.f32.mrb[0].mxu0
        %771 = vdwg.mxu0
        %v772 = vadd.f32 %v625, %v734
        %v773 = vadd.f32 %v626, %v739
        %v774 = vadd.f32 %v627, %v744
        %v775 = vadd.f32 %v628, %v749
        %v776 = vadd.f32 %v629, %v754
        %v777 = vadd.f32 %v630, %v759
        %v778 = vadd.f32 %v631, %v764
        %v779 = vadd.f32 %v632, %v769
        %v780 = vld [vmem:[%s2] sm:$0x1]
        %v782 = vlaneseq
        %v783 = vshrl.u32 %v782, 7
        %v784 = vsub.s32 0, %v783
        %v785 = vrot.slane %v780, %v784
        %v787 = vadd.f32 %v772, %v785
        %v788 = vadd.f32 %v773, %v785
        %v789 = vadd.f32 %v774, %v785
        %v790 = vadd.f32 %v775, %v785
        %v791 = vadd.f32 %v776, %v785
        %v792 = vadd.f32 %v777, %v785
        %v793 = vadd.f32 %v778, %v785
        %v794 = vadd.f32 %v779, %v785
        %vm795 = vcmask 31744
        %796 = vst.msk [vmem:[%s192] sm:$0xff] %vm795, %v787
        %797 = vst.msk [vmem:[%s192 + $0x8] sm:$0xff] %vm795, %v788
        %798 = vst.msk [vmem:[%s192 + $0x10] sm:$0xff] %vm795, %v789
        %799 = vst.msk [vmem:[%s192 + $0x18] sm:$0xff] %vm795, %v790
        %800 = vst.msk [vmem:[%s192 + $0x20] sm:$0xff] %vm795, %v791
        %801 = vst.msk [vmem:[%s192 + $0x28] sm:$0xff] %vm795, %v792
        %802 = vst.msk [vmem:[%s192 + $0x30] sm:$0xff] %vm795, %v793
        %803 = vst.msk [vmem:[%s192 + $0x38] sm:$0xff] %vm795, %v794
        %v804 = vld [vmem:[%s204 + $0x1] sm:$0xff]
        %v805 = vld [vmem:[%s204 + $0x11] sm:$0xff]
        %v806 = vld [vmem:[%s204 + $0x21] sm:$0xff]
        %v807 = vld [vmem:[%s204 + $0x31] sm:$0xff]
        %v808 = vld [vmem:[%s204 + $0x41] sm:$0xff]
        %v809 = vld [vmem:[%s204 + $0x51] sm:$0xff]
        %v810 = vld [vmem:[%s204 + $0x61] sm:$0xff]
        %v811 = vld [vmem:[%s204 + $0x71] sm:$0xff]
        %s812 = scalar_lea.vmem %s202, 32
        %v813 = vld [vmem:[%s812] sm:$0xff]
        %v814 = vld [vmem:[%s204 + $0x2] sm:$0xff]
        %v815 = vld [vmem:[%s204 + $0x12] sm:$0xff]
        %v816 = vld [vmem:[%s204 + $0x22] sm:$0xff]
        %v817 = vld [vmem:[%s204 + $0x32] sm:$0xff]
        %v818 = vld [vmem:[%s204 + $0x42] sm:$0xff]
        %v819 = vld [vmem:[%s204 + $0x52] sm:$0xff]
        %v820 = vld [vmem:[%s204 + $0x62] sm:$0xff]
        %v821 = vld [vmem:[%s204 + $0x72] sm:$0xff]
        %s822 = scalar_lea.vmem %s202, 40
        %v823 = vld [vmem:[%s822] sm:$0xff]
        %v825 = vsel %vm224, %v814, 0
        %v828 = vsel %vm224, %v815, 0
        %v831 = vsel %vm224, %v816, 0
        %v834 = vsel %vm224, %v817, 0
        %v837 = vsel %vm224, %v818, 0
        %v840 = vsel %vm224, %v819, 0
        %v843 = vsel %vm224, %v820, 0
        %v846 = vsel %vm224, %v821, 0
        %848 = vmatprep.subr.mxu0 0.0
        %849 = vmatpush1.msra.mxu0 %v823
        %850 = vmatprep.subr.mxu0 0.0
        %851 = vmatpush1.msra.mxu0 0.0
        %852 = vmatprep.subr.mxu0 0.0
        %853 = vmatpush1.msra.mxu0 0.0
        %854 = vmatprep.subr.mxu0 0.0
        %855 = vmatpush1.msra.mxu0 0.0
        %856 = vmatprep.subr.mxu0 0.0
        %857 = vmatpush1.msra.mxu0 0.0
        %858 = vmatprep.subr.mxu0 0.0
        %859 = vmatpush1.msra.mxu0 0.0
        %860 = vmatprep.subr.mxu0 0.0
        %861 = vmatpush1.msra.mxu0 0.0
        %862 = vmatprep.subr.mxu0 0.0
        %863 = vmatpush1.msra.mxu0 0.0
        %864 = vmatprep.subr.mxu0 0.0
        %865 = vmatpush1.msra.mxu0 0.0
        %866 = vmatprep.subr.mxu0 0.0
        %867 = vmatpush1.msra.mxu0 0.0
        %868 = vmatprep.subr.mxu0 0.0
        %869 = vmatpush1.msra.mxu0 0.0
        %870 = vmatprep.subr.mxu0 0.0
        %871 = vmatpush1.msra.mxu0 0.0
        %872 = vmatprep.subr.mxu0 0.0
        %873 = vmatpush1.msra.mxu0 0.0
        %874 = vmatprep.subr.mxu0 0.0
        %875 = vmatpush1.msra.mxu0 0.0
        %876 = vmatprep.subr.mxu0 0.0
        %877 = vmatpush1.msra.mxu0 0.0
        %878 = vmatprep.subr.mxu0 0.0
        %879 = vmatpush1.msra.mxu0 0.0
        %880 = vmatprep.subr.mxu0 0.0
        %881 = vmatpush1.msra.mxu0 0.0
        %882 = vmatprep.subr.mxu0 0.0
        %883 = vmatpush1.msra.mxu0 0.0
        %884 = vmatprep.subr.mxu0 0.0
        %885 = vmatpush1.msra.mxu0 0.0
        %886 = vmatprep.subr.mxu0 0.0
        %887 = vmatpush1.msra.mxu0 0.0
        %888 = vmatprep.subr.mxu0 0.0
        %889 = vmatpush1.msra.mxu0 0.0
        %890 = vmatprep.subr.mxu0 0.0
        %891 = vmatpush1.msra.mxu0 0.0
        %892 = vmatprep.subr.mxu0 0.0
        %893 = vmatpush1.msra.mxu0 0.0
        %894 = vmatprep.subr.mxu0 0.0
        %895 = vmatpush1.msra.mxu0 0.0
        %896 = vmatprep.subr.mxu0 0.0
        %897 = vmatpush1.msra.mxu0 0.0
        %898 = vmatprep.subr.mxu0 0.0
        %899 = vmatpush1.msra.mxu0 0.0
        %900 = vmatprep.subr.mxu0 0.0
        %901 = vmatpush1.msra.mxu0 0.0
        %902 = vmatprep.subr.mxu0 0.0
        %903 = vmatpush1.msra.mxu0 0.0
        %904 = vmatprep.subr.mxu0 0.0
        %905 = vmatpush1.msra.mxu0 0.0
        %906 = vmatprep.subr.mxu0 0.0
        %907 = vmatpush1.msra.mxu0 0.0
        %908 = vmatprep.subr.mxu0 0.0
        %909 = vmatpush1.msra.mxu0 0.0
        %910 = vmatprep.subr.mxu0 0.0
        %911 = vmatpush1.msra.mxu0 0.0
        %912 = vmatprep.mubr.f32.mxu0 0.0
        %913 = vmatmul.mubr.f32.gmra.mrb[0].mxu0 %v825
        %v914 = vpop.f32.mrb[0].mxu0
        %v915 = vadd.f32 0.0, %v914
        %v916 = vpop.f32.mrb[0].mxu0
        %917 = vmatprep.mubr.f32.mxu0 0.0
        %918 = vmatmul.mubr.f32.gmra.mrb[0].mxu0 %v828
        %v919 = vpop.f32.mrb[0].mxu0
        %v920 = vadd.f32 0.0, %v919
        %v921 = vpop.f32.mrb[0].mxu0
        %922 = vmatprep.mubr.f32.mxu0 0.0
        %923 = vmatmul.mubr.f32.gmra.mrb[0].mxu0 %v831
        %v924 = vpop.f32.mrb[0].mxu0
        %v925 = vadd.f32 0.0, %v924
        %v926 = vpop.f32.mrb[0].mxu0
        %927 = vmatprep.mubr.f32.mxu0 0.0
        %928 = vmatmul.mubr.f32.gmra.mrb[0].mxu0 %v834
        %v929 = vpop.f32.mrb[0].mxu0
        %v930 = vadd.f32 0.0, %v929
        %v931 = vpop.f32.mrb[0].mxu0
        %932 = vmatprep.mubr.f32.mxu0 0.0
        %933 = vmatmul.mubr.f32.gmra.mrb[0].mxu0 %v837
        %v934 = vpop.f32.mrb[0].mxu0
        %v935 = vadd.f32 0.0, %v934
        %v936 = vpop.f32.mrb[0].mxu0
        %937 = vmatprep.mubr.f32.mxu0 0.0
        %938 = vmatmul.mubr.f32.gmra.mrb[0].mxu0 %v840
        %v939 = vpop.f32.mrb[0].mxu0
        %v940 = vadd.f32 0.0, %v939
        %v941 = vpop.f32.mrb[0].mxu0
        %942 = vmatprep.mubr.f32.mxu0 0.0
        %943 = vmatmul.mubr.f32.gmra.mrb[0].mxu0 %v843
        %v944 = vpop.f32.mrb[0].mxu0
        %v945 = vadd.f32 0.0, %v944
        %v946 = vpop.f32.mrb[0].mxu0
        %947 = vmatprep.mubr.f32.mxu0 0.0
        %948 = vmatmul.mubr.f32.gmra.mrb[0].mxu0 %v846
        %v949 = vpop.f32.mrb[0].mxu0
        %v950 = vadd.f32 0.0, %v949
        %v951 = vpop.f32.mrb[0].mxu0
        %952 = vdwg.mxu0
        %v954 = vsel %vm224, %v804, 0
        %v957 = vsel %vm224, %v805, 0
        %v960 = vsel %vm224, %v806, 0
        %v963 = vsel %vm224, %v807, 0
        %v966 = vsel %vm224, %v808, 0
        %v969 = vsel %vm224, %v809, 0
        %v972 = vsel %vm224, %v810, 0
        %v975 = vsel %vm224, %v811, 0
        %977 = vmatprep.subr.mxu0 0.0
        %978 = vmatpush1.msra.mxu0 %v813
        %979 = vmatprep.subr.mxu0 0.0
        %980 = vmatpush1.msra.mxu0 0.0
        %981 = vmatprep.subr.mxu0 0.0
        %982 = vmatpush1.msra.mxu0 0.0
        %983 = vmatprep.subr.mxu0 0.0
        %984 = vmatpush1.msra.mxu0 0.0
        %985 = vmatprep.subr.mxu0 0.0
        %986 = vmatpush1.msra.mxu0 0.0
        %987 = vmatprep.subr.mxu0 0.0
        %988 = vmatpush1.msra.mxu0 0.0
        %989 = vmatprep.subr.mxu0 0.0
        %990 = vmatpush1.msra.mxu0 0.0
        %991 = vmatprep.subr.mxu0 0.0
        %992 = vmatpush1.msra.mxu0 0.0
        %993 = vmatprep.subr.mxu0 0.0
        %994 = vmatpush1.msra.mxu0 0.0
        %995 = vmatprep.subr.mxu0 0.0
        %996 = vmatpush1.msra.mxu0 0.0
        %997 = vmatprep.subr.mxu0 0.0
        %998 = vmatpush1.msra.mxu0 0.0
        %999 = vmatprep.subr.mxu0 0.0
        %1000 = vmatpush1.msra.mxu0 0.0
        %1001 = vmatprep.subr.mxu0 0.0
        %1002 = vmatpush1.msra.mxu0 0.0
        %1003 = vmatprep.subr.mxu0 0.0
        %1004 = vmatpush1.msra.mxu0 0.0
        %1005 = vmatprep.subr.mxu0 0.0
        %1006 = vmatpush1.msra.mxu0 0.0
        %1007 = vmatprep.subr.mxu0 0.0
        %1008 = vmatpush1.msra.mxu0 0.0
        %1009 = vmatprep.subr.mxu0 0.0
        %1010 = vmatpush1.msra.mxu0 0.0
        %1011 = vmatprep.subr.mxu0 0.0
        %1012 = vmatpush1.msra.mxu0 0.0
        %1013 = vmatprep.subr.mxu0 0.0
        %1014 = vmatpush1.msra.mxu0 0.0
        %1015 = vmatprep.subr.mxu0 0.0
        %1016 = vmatpush1.msra.mxu0 0.0
        %1017 = vmatprep.subr.mxu0 0.0
        %1018 = vmatpush1.msra.mxu0 0.0
        %1019 = vmatprep.subr.mxu0 0.0
        %1020 = vmatpush1.msra.mxu0 0.0
        %1021 = vmatprep.subr.mxu0 0.0
        %1022 = vmatpush1.msra.mxu0 0.0
        %1023 = vmatprep.subr.mxu0 0.0
        %1024 = vmatpush1.msra.mxu0 0.0
        %1025 = vmatprep.subr.mxu0 0.0
        %1026 = vmatpush1.msra.mxu0 0.0
        %1027 = vmatprep.subr.mxu0 0.0
        %1028 = vmatpush1.msra.mxu0 0.0
        %1029 = vmatprep.subr.mxu0 0.0
        %1030 = vmatpush1.msra.mxu0 0.0
        %1031 = vmatprep.subr.mxu0 0.0
        %1032 = vmatpush1.msra.mxu0 0.0
        %1033 = vmatprep.subr.mxu0 0.0
        %1034 = vmatpush1.msra.mxu0 0.0
        %1035 = vmatprep.subr.mxu0 0.0
        %1036 = vmatpush1.msra.mxu0 0.0
        %1037 = vmatprep.subr.mxu0 0.0
        %1038 = vmatpush1.msra.mxu0 0.0
        %1039 = vmatprep.subr.mxu0 0.0
        %1040 = vmatpush1.msra.mxu0 0.0
        %1041 = vmatprep.mubr.f32.mxu0 0.0
        %1042 = vmatmul.mubr.f32.gmra.mrb[0].mxu0 %v954
        %v1043 = vpop.f32.mrb[0].mxu0
        %v1044 = vadd.f32 %v915, %v1043
        %v1045 = vpop.f32.mrb[0].mxu0
        %1046 = vmatprep.mubr.f32.mxu0 0.0
        %1047 = vmatmul.mubr.f32.gmra.mrb[0].mxu0 %v957
        %v1048 = vpop.f32.mrb[0].mxu0
        %v1049 = vadd.f32 %v920, %v1048
        %v1050 = vpop.f32.mrb[0].mxu0
        %1051 = vmatprep.mubr.f32.mxu0 0.0
        %1052 = vmatmul.mubr.f32.gmra.mrb[0].mxu0 %v960
        %v1053 = vpop.f32.mrb[0].mxu0
        %v1054 = vadd.f32 %v925, %v1053
        %v1055 = vpop.f32.mrb[0].mxu0
        %1056 = vmatprep.mubr.f32.mxu0 0.0
        %1057 = vmatmul.mubr.f32.gmra.mrb[0].mxu0 %v963
        %v1058 = vpop.f32.mrb[0].mxu0
        %v1059 = vadd.f32 %v930, %v1058
        %v1060 = vpop.f32.mrb[0].mxu0
        %1061 = vmatprep.mubr.f32.mxu0 0.0
        %1062 = vmatmul.mubr.f32.gmra.mrb[0].mxu0 %v966
        %v1063 = vpop.f32.mrb[0].mxu0
        %v1064 = vadd.f32 %v935, %v1063
        %v1065 = vpop.f32.mrb[0].mxu0
        %1066 = vmatprep.mubr.f32.mxu0 0.0
        %1067 = vmatmul.mubr.f32.gmra.mrb[0].mxu0 %v969
        %v1068 = vpop.f32.mrb[0].mxu0
        %v1069 = vadd.f32 %v940, %v1068
        %v1070 = vpop.f32.mrb[0].mxu0
        %1071 = vmatprep.mubr.f32.mxu0 0.0
        %1072 = vmatmul.mubr.f32.gmra.mrb[0].mxu0 %v972
        %v1073 = vpop.f32.mrb[0].mxu0
        %v1074 = vadd.f32 %v945, %v1073
        %v1075 = vpop.f32.mrb[0].mxu0
        %1076 = vmatprep.mubr.f32.mxu0 0.0
        %1077 = vmatmul.mubr.f32.gmra.mrb[0].mxu0 %v975
        %v1078 = vpop.f32.mrb[0].mxu0
        %v1079 = vadd.f32 %v950, %v1078
        %v1080 = vpop.f32.mrb[0].mxu0
        %1081 = vdwg.mxu0
        %v1082 = vld [vmem:[%s485 + $0x1] sm:$0xff]
        %v1083 = vld [vmem:[%s485 + $0x11] sm:$0xff]
        %v1084 = vld [vmem:[%s485 + $0x21] sm:$0xff]
        %v1085 = vld [vmem:[%s485 + $0x31] sm:$0xff]
        %v1086 = vld [vmem:[%s485 + $0x41] sm:$0xff]
        %v1087 = vld [vmem:[%s485 + $0x51] sm:$0xff]
        %v1088 = vld [vmem:[%s485 + $0x61] sm:$0xff]
        %v1089 = vld [vmem:[%s485 + $0x71] sm:$0xff]
        %s1090 = scalar_lea.vmem %s202, 48
        %v1091 = vld [vmem:[%s1090] sm:$0xff]
        %v1093 = vsel %vm224, %v1082, 0
        %v1096 = vsel %vm224, %v1083, 0
        %v1099 = vsel %vm224, %v1084, 0
        %v1102 = vsel %vm224, %v1085, 0
        %v1105 = vsel %vm224, %v1086, 0
        %v1108 = vsel %vm224, %v1087, 0
        %v1111 = vsel %vm224, %v1088, 0
        %v1114 = vsel %vm224, %v1089, 0
        %1116 = vmatprep.subr.mxu0 0.0
        %1117 = vmatpush1.msra.mxu0 %v1091
        %1118 = vmatprep.subr.mxu0 0.0
        %1119 = vmatpush1.msra.mxu0 0.0
        %1120 = vmatprep.subr.mxu0 0.0
        %1121 = vmatpush1.msra.mxu0 0.0
        %1122 = vmatprep.subr.mxu0 0.0
        %1123 = vmatpush1.msra.mxu0 0.0
        %1124 = vmatprep.subr.mxu0 0.0
        %1125 = vmatpush1.msra.mxu0 0.0
        %1126 = vmatprep.subr.mxu0 0.0
        %1127 = vmatpush1.msra.mxu0 0.0
        %1128 = vmatprep.subr.mxu0 0.0
        %1129 = vmatpush1.msra.mxu0 0.0
        %1130 = vmatprep.subr.mxu0 0.0
        %1131 = vmatpush1.msra.mxu0 0.0
        %1132 = vmatprep.subr.mxu0 0.0
        %1133 = vmatpush1.msra.mxu0 0.0
        %1134 = vmatprep.subr.mxu0 0.0
        %1135 = vmatpush1.msra.mxu0 0.0
        %1136 = vmatprep.subr.mxu0 0.0
        %1137 = vmatpush1.msra.mxu0 0.0
        %1138 = vmatprep.subr.mxu0 0.0
        %1139 = vmatpush1.msra.mxu0 0.0
        %1140 = vmatprep.subr.mxu0 0.0
        %1141 = vmatpush1.msra.mxu0 0.0
        %1142 = vmatprep.subr.mxu0 0.0
        %1143 = vmatpush1.msra.mxu0 0.0
        %1144 = vmatprep.subr.mxu0 0.0
        %1145 = vmatpush1.msra.mxu0 0.0
        %1146 = vmatprep.subr.mxu0 0.0
        %1147 = vmatpush1.msra.mxu0 0.0
        %1148 = vmatprep.subr.mxu0 0.0
        %1149 = vmatpush1.msra.mxu0 0.0
        %1150 = vmatprep.subr.mxu0 0.0
        %1151 = vmatpush1.msra.mxu0 0.0
        %1152 = vmatprep.subr.mxu0 0.0
        %1153 = vmatpush1.msra.mxu0 0.0
        %1154 = vmatprep.subr.mxu0 0.0
        %1155 = vmatpush1.msra.mxu0 0.0
        %1156 = vmatprep.subr.mxu0 0.0
        %1157 = vmatpush1.msra.mxu0 0.0
        %1158 = vmatprep.subr.mxu0 0.0
        %1159 = vmatpush1.msra.mxu0 0.0
        %1160 = vmatprep.subr.mxu0 0.0
        %1161 = vmatpush1.msra.mxu0 0.0
        %1162 = vmatprep.subr.mxu0 0.0
        %1163 = vmatpush1.msra.mxu0 0.0
        %1164 = vmatprep.subr.mxu0 0.0
        %1165 = vmatpush1.msra.mxu0 0.0
        %1166 = vmatprep.subr.mxu0 0.0
        %1167 = vmatpush1.msra.mxu0 0.0
        %1168 = vmatprep.subr.mxu0 0.0
        %1169 = vmatpush1.msra.mxu0 0.0
        %1170 = vmatprep.subr.mxu0 0.0
        %1171 = vmatpush1.msra.mxu0 0.0
        %1172 = vmatprep.subr.mxu0 0.0
        %1173 = vmatpush1.msra.mxu0 0.0
        %1174 = vmatprep.subr.mxu0 0.0
        %1175 = vmatpush1.msra.mxu0 0.0
        %1176 = vmatprep.subr.mxu0 0.0
        %1177 = vmatpush1.msra.mxu0 0.0
        %1178 = vmatprep.subr.mxu0 0.0
        %1179 = vmatpush1.msra.mxu0 0.0
        %1180 = vmatprep.mubr.f32.mxu0 0.0
        %1181 = vmatmul.mubr.f32.gmra.mrb[0].mxu0 %v1093
        %v1182 = vpop.f32.mrb[0].mxu0
        %v1183 = vadd.f32 0.0, %v1182
        %v1184 = vpop.f32.mrb[0].mxu0
        %1185 = vmatprep.mubr.f32.mxu0 0.0
        %1186 = vmatmul.mubr.f32.gmra.mrb[0].mxu0 %v1096
        %v1187 = vpop.f32.mrb[0].mxu0
        %v1188 = vadd.f32 0.0, %v1187
        %v1189 = vpop.f32.mrb[0].mxu0
        %1190 = vmatprep.mubr.f32.mxu0 0.0
        %1191 = vmatmul.mubr.f32.gmra.mrb[0].mxu0 %v1099
        %v1192 = vpop.f32.mrb[0].mxu0
        %v1193 = vadd.f32 0.0, %v1192
        %v1194 = vpop.f32.mrb[0].mxu0
        %1195 = vmatprep.mubr.f32.mxu0 0.0
        %1196 = vmatmul.mubr.f32.gmra.mrb[0].mxu0 %v1102
        %v1197 = vpop.f32.mrb[0].mxu0
        %v1198 = vadd.f32 0.0, %v1197
        %v1199 = vpop.f32.mrb[0].mxu0
        %1200 = vmatprep.mubr.f32.mxu0 0.0
        %1201 = vmatmul.mubr.f32.gmra.mrb[0].mxu0 %v1105
        %v1202 = vpop.f32.mrb[0].mxu0
        %v1203 = vadd.f32 0.0, %v1202
        %v1204 = vpop.f32.mrb[0].mxu0
        %1205 = vmatprep.mubr.f32.mxu0 0.0
        %1206 = vmatmul.mubr.f32.gmra.mrb[0].mxu0 %v1108
        %v1207 = vpop.f32.mrb[0].mxu0
        %v1208 = vadd.f32 0.0, %v1207
        %v1209 = vpop.f32.mrb[0].mxu0
        %1210 = vmatprep.mubr.f32.mxu0 0.0
        %1211 = vmatmul.mubr.f32.gmra.mrb[0].mxu0 %v1111
        %v1212 = vpop.f32.mrb[0].mxu0
        %v1213 = vadd.f32 0.0, %v1212
        %v1214 = vpop.f32.mrb[0].mxu0
        %1215 = vmatprep.mubr.f32.mxu0 0.0
        %1216 = vmatmul.mubr.f32.gmra.mrb[0].mxu0 %v1114
        %v1217 = vpop.f32.mrb[0].mxu0
        %v1218 = vadd.f32 0.0, %v1217
        %v1219 = vpop.f32.mrb[0].mxu0
        %1220 = vdwg.mxu0
        %v1221 = vadd.f32 %v1044, %v1183
        %v1222 = vadd.f32 %v1049, %v1188
        %v1223 = vadd.f32 %v1054, %v1193
        %v1224 = vadd.f32 %v1059, %v1198
        %v1225 = vadd.f32 %v1064, %v1203
        %v1226 = vadd.f32 %v1069, %v1208
        %v1227 = vadd.f32 %v1074, %v1213
        %v1228 = vadd.f32 %v1079, %v1218
        %v1229 = vld [vmem:[%s485 + $0x2] sm:$0xff]
        %v1230 = vld [vmem:[%s485 + $0x12] sm:$0xff]
        %v1231 = vld [vmem:[%s485 + $0x22] sm:$0xff]
        %v1232 = vld [vmem:[%s485 + $0x32] sm:$0xff]
        %v1233 = vld [vmem:[%s485 + $0x42] sm:$0xff]
        %v1234 = vld [vmem:[%s485 + $0x52] sm:$0xff]
        %v1235 = vld [vmem:[%s485 + $0x62] sm:$0xff]
        %v1236 = vld [vmem:[%s485 + $0x72] sm:$0xff]
        %s1237 = scalar_lea.vmem %s202, 56
        %v1238 = vld [vmem:[%s1237] sm:$0xff]
        %v1240 = vsel %vm224, %v1229, 0
        %v1243 = vsel %vm224, %v1230, 0
        %v1246 = vsel %vm224, %v1231, 0
        %v1249 = vsel %vm224, %v1232, 0
        %v1252 = vsel %vm224, %v1233, 0
        %v1255 = vsel %vm224, %v1234, 0
        %v1258 = vsel %vm224, %v1235, 0
        %v1261 = vsel %vm224, %v1236, 0
        %1263 = vmatprep.subr.mxu0 0.0
        %1264 = vmatpush1.msra.mxu0 %v1238
        %1265 = vmatprep.subr.mxu0 0.0
        %1266 = vmatpush1.msra.mxu0 0.0
        %1267 = vmatprep.subr.mxu0 0.0
        %1268 = vmatpush1.msra.mxu0 0.0
        %1269 = vmatprep.subr.mxu0 0.0
        %1270 = vmatpush1.msra.mxu0 0.0
        %1271 = vmatprep.subr.mxu0 0.0
        %1272 = vmatpush1.msra.mxu0 0.0
        %1273 = vmatprep.subr.mxu0 0.0
        %1274 = vmatpush1.msra.mxu0 0.0
        %1275 = vmatprep.subr.mxu0 0.0
        %1276 = vmatpush1.msra.mxu0 0.0
        %1277 = vmatprep.subr.mxu0 0.0
        %1278 = vmatpush1.msra.mxu0 0.0
        %1279 = vmatprep.subr.mxu0 0.0
        %1280 = vmatpush1.msra.mxu0 0.0
        %1281 = vmatprep.subr.mxu0 0.0
        %1282 = vmatpush1.msra.mxu0 0.0
        %1283 = vmatprep.subr.mxu0 0.0
        %1284 = vmatpush1.msra.mxu0 0.0
        %1285 = vmatprep.subr.mxu0 0.0
        %1286 = vmatpush1.msra.mxu0 0.0
        %1287 = vmatprep.subr.mxu0 0.0
        %1288 = vmatpush1.msra.mxu0 0.0
        %1289 = vmatprep.subr.mxu0 0.0
        %1290 = vmatpush1.msra.mxu0 0.0
        %1291 = vmatprep.subr.mxu0 0.0
        %1292 = vmatpush1.msra.mxu0 0.0
        %1293 = vmatprep.subr.mxu0 0.0
        %1294 = vmatpush1.msra.mxu0 0.0
        %1295 = vmatprep.subr.mxu0 0.0
        %1296 = vmatpush1.msra.mxu0 0.0
        %1297 = vmatprep.subr.mxu0 0.0
        %1298 = vmatpush1.msra.mxu0 0.0
        %1299 = vmatprep.subr.mxu0 0.0
        %1300 = vmatpush1.msra.mxu0 0.0
        %1301 = vmatprep.subr.mxu0 0.0
        %1302 = vmatpush1.msra.mxu0 0.0
        %1303 = vmatprep.subr.mxu0 0.0
        %1304 = vmatpush1.msra.mxu0 0.0
        %1305 = vmatprep.subr.mxu0 0.0
        %1306 = vmatpush1.msra.mxu0 0.0
        %1307 = vmatprep.subr.mxu0 0.0
        %1308 = vmatpush1.msra.mxu0 0.0
        %1309 = vmatprep.subr.mxu0 0.0
        %1310 = vmatpush1.msra.mxu0 0.0
        %1311 = vmatprep.subr.mxu0 0.0
        %1312 = vmatpush1.msra.mxu0 0.0
        %1313 = vmatprep.subr.mxu0 0.0
        %1314 = vmatpush1.msra.mxu0 0.0
        %1315 = vmatprep.subr.mxu0 0.0
        %1316 = vmatpush1.msra.mxu0 0.0
        %1317 = vmatprep.subr.mxu0 0.0
        %1318 = vmatpush1.msra.mxu0 0.0
        %1319 = vmatprep.subr.mxu0 0.0
        %1320 = vmatpush1.msra.mxu0 0.0
        %1321 = vmatprep.subr.mxu0 0.0
        %1322 = vmatpush1.msra.mxu0 0.0
        %1323 = vmatprep.subr.mxu0 0.0
        %1324 = vmatpush1.msra.mxu0 0.0
        %1325 = vmatprep.subr.mxu0 0.0
        %1326 = vmatpush1.msra.mxu0 0.0
        %1327 = vmatprep.mubr.f32.mxu0 0.0
        %1328 = vmatmul.mubr.f32.gmra.mrb[0].mxu0 %v1240
        %v1329 = vpop.f32.mrb[0].mxu0
        %v1330 = vadd.f32 0.0, %v1329
        %v1331 = vpop.f32.mrb[0].mxu0
        %1332 = vmatprep.mubr.f32.mxu0 0.0
        %1333 = vmatmul.mubr.f32.gmra.mrb[0].mxu0 %v1243
        %v1334 = vpop.f32.mrb[0].mxu0
        %v1335 = vadd.f32 0.0, %v1334
        %v1336 = vpop.f32.mrb[0].mxu0
        %1337 = vmatprep.mubr.f32.mxu0 0.0
        %1338 = vmatmul.mubr.f32.gmra.mrb[0].mxu0 %v1246
        %v1339 = vpop.f32.mrb[0].mxu0
        %v1340 = vadd.f32 0.0, %v1339
        %v1341 = vpop.f32.mrb[0].mxu0
        %1342 = vmatprep.mubr.f32.mxu0 0.0
        %1343 = vmatmul.mubr.f32.gmra.mrb[0].mxu0 %v1249
        %v1344 = vpop.f32.mrb[0].mxu0
        %v1345 = vadd.f32 0.0, %v1344
        %v1346 = vpop.f32.mrb[0].mxu0
        %1347 = vmatprep.mubr.f32.mxu0 0.0
        %1348 = vmatmul.mubr.f32.gmra.mrb[0].mxu0 %v1252
        %v1349 = vpop.f32.mrb[0].mxu0
        %v1350 = vadd.f32 0.0, %v1349
        %v1351 = vpop.f32.mrb[0].mxu0
        %1352 = vmatprep.mubr.f32.mxu0 0.0
        %1353 = vmatmul.mubr.f32.gmra.mrb[0].mxu0 %v1255
        %v1354 = vpop.f32.mrb[0].mxu0
        %v1355 = vadd.f32 0.0, %v1354
        %v1356 = vpop.f32.mrb[0].mxu0
        %1357 = vmatprep.mubr.f32.mxu0 0.0
        %1358 = vmatmul.mubr.f32.gmra.mrb[0].mxu0 %v1258
        %v1359 = vpop.f32.mrb[0].mxu0
        %v1360 = vadd.f32 0.0, %v1359
        %v1361 = vpop.f32.mrb[0].mxu0
        %1362 = vmatprep.mubr.f32.mxu0 0.0
        %1363 = vmatmul.mubr.f32.gmra.mrb[0].mxu0 %v1261
        %v1364 = vpop.f32.mrb[0].mxu0
        %v1365 = vadd.f32 0.0, %v1364
        %v1366 = vpop.f32.mrb[0].mxu0
        %1367 = vdwg.mxu0
        %v1368 = vadd.f32 %v1221, %v1330
        %v1369 = vadd.f32 %v1222, %v1335
        %v1370 = vadd.f32 %v1223, %v1340
        %v1371 = vadd.f32 %v1224, %v1345
        %v1372 = vadd.f32 %v1225, %v1350
        %v1373 = vadd.f32 %v1226, %v1355
        %v1374 = vadd.f32 %v1227, %v1360
        %v1375 = vadd.f32 %v1228, %v1365
        %v1376 = vld [vmem:[%s2] sm:$0x1]
        %v1378 = vlaneseq
        %v1379 = vshrl.u32 %v1378, 7
        %v1380 = vsub.s32 0, %v1379
        %v1381 = vrot.slane %v1376, %v1380
        %v1383 = vadd.f32 %v1368, %v1381
        %v1384 = vadd.f32 %v1369, %v1381
        %v1385 = vadd.f32 %v1370, %v1381
        %v1386 = vadd.f32 %v1371, %v1381
        %v1387 = vadd.f32 %v1372, %v1381
        %v1388 = vadd.f32 %v1373, %v1381
        %v1389 = vadd.f32 %v1374, %v1381
        %v1390 = vadd.f32 %v1375, %v1381
        %1399 = vrot.lane.b32.xlu0 %v1383, 4
        %v1400 = vpop.permute.xlu0 %1399
        %1401 = vrot.lane.b32.xlu0 %v1384, 4
        %v1402 = vpop.permute.xlu0 %1401
        %1403 = vrot.lane.b32.xlu0 %v1385, 4
        %v1404 = vpop.permute.xlu0 %1403
        %1405 = vrot.lane.b32.xlu0 %v1386, 4
        %v1406 = vpop.permute.xlu0 %1405
        %1407 = vrot.lane.b32.xlu0 %v1387, 4
        %v1408 = vpop.permute.xlu0 %1407
        %1409 = vrot.lane.b32.xlu0 %v1388, 4
        %v1410 = vpop.permute.xlu0 %1409
        %1411 = vrot.lane.b32.xlu0 %v1389, 4
        %v1412 = vpop.permute.xlu0 %1411
        %1413 = vrot.lane.b32.xlu0 %v1390, 4
        %v1414 = vpop.permute.xlu0 %1413
        %vm1423 = vcmask 64544
        %1424 = vst.msk [vmem:[%s192] sm:$0xff] %vm1423, %v1400
        %1425 = vst.msk [vmem:[%s192 + $0x8] sm:$0xff] %vm1423, %v1402
        %1426 = vst.msk [vmem:[%s192 + $0x10] sm:$0xff] %vm1423, %v1404
        %1427 = vst.msk [vmem:[%s192 + $0x18] sm:$0xff] %vm1423, %v1406
        %1428 = vst.msk [vmem:[%s192 + $0x20] sm:$0xff] %vm1423, %v1408
        %1429 = vst.msk [vmem:[%s192 + $0x28] sm:$0xff] %vm1423, %v1410
        %1430 = vst.msk [vmem:[%s192 + $0x30] sm:$0xff] %vm1423, %v1412
        %1431 = vst.msk [vmem:[%s192 + $0x38] sm:$0xff] %vm1423, %v1414
        %s1432 = sand.u32 %s112, 1
        %s1433 = scalar_lea.sflag [#allocation3], %s1432
        %s1434 = sand.u32 %s112, 1
        %s1435 = smul.addr %s1434, 64
        %s1436 = scalar_lea.vmem [#allocation2], %s1435
        // Predicated region
        $region33: #{tpu_custom_call.1} parent=31 // pred_check
          %p1437 = pneg %p122
        $region34: #{tpu_custom_call.1} parent=31 // pred_check_branch
          %1439 = sbr.rel (%p1437) target = $region36
        $region35: #{tpu_custom_call.1} parent=31 // pred_region
          %s1441 = ssub.s32 1024, 1024
          %1442 = vsyncadd %s1433, %s1441
          %s1443 = smul.addr %s21, 16
          %s1444 = sadd.s32 %s22, %s1443
          %s1445 = smul.addr %s1444, 128
          %s1446 = scalar_lea.hbm %s3, %s1445
          %s1447 = sshll.u32 %s1436, 4
          %s1448 = int_to_ptr.vmem [resolvable:$true] %s1447
          %1453 = dma.vmem_to_hbm [thread:$0]  %s1448, 1024, %s1446, %s1433, 128, 256, 8
        $region36: #{tpu_custom_call.1} parent=31 // pred_fallthru
          _
      $region32: #{tpu_custom_call.1} parent=5 // pred_fallthru
        _
      %p1454 = scmp.le.s32.totalorder 2, %s12
      // Predicated region
      $region37: #{tpu_custom_call.1} parent=5 // pred_check
        %p1455 = pneg %p1454
      $region38: #{tpu_custom_call.1} parent=5 // pred_check_branch
        %1457 = sbr.rel (%p1455) target = $region40
      $region39: #{tpu_custom_call.1} parent=5 // pred_region
        %s1458 = ssub.s32 %s12, 2
        // Predicated region
        $region41: #{tpu_custom_call.1} parent=39 // pred_check
          %p1459 = pneg %p128
        $region42: #{tpu_custom_call.1} parent=39 // pred_check_branch
          %1461 = sbr.rel (%p1459) target = $region44
        $region43: #{tpu_custom_call.1} parent=39 // pred_region
          %s1462 = sand.u32 %s113, 1
          %s1463 = scalar_lea.sflag [#allocation3], %s1462
          %s1464 = sand.u32 %s113, 1
          %s1465 = smul.addr %s1464, 64
          %s1466 = scalar_lea.vmem [#allocation2], %s1465
          %1467 = dma.done %s1463, 1024
        $region44: #{tpu_custom_call.1} parent=39 // pred_fallthru
          _
      $region40: #{tpu_custom_call.1} parent=5 // pred_fallthru
        _
    $region6: #{tpu_custom_call.1} parent=1 // loop_footer
      %s16 = sadd.s32 1, %s12
    $region7: #{tpu_custom_call.1} parent=1 // loop_footer_branch
      %11 = sbr.rel target = $region3
    $region8: #{tpu_custom_call.1} parent=1 // loop_exit
      _
    %1468 = vsyncpa [#allocation3], 1
    %s1469 = scalar_lea.sflag [#allocation3], 1
    %1470 = vsyncpa %s1469, 1

</llo_original>
